<compile_context>
chip_gen: v5e
topology: v5e:2x2
jax: 0.10.0
libtpu: 0.0.40
codegen_flags: <defaults>
</compile_context>

<pallas_src>
import jax
import jax.numpy as jnp
from jax import lax
from jax.experimental import pallas as pl
from jax.experimental.pallas import tpu as pltpu

EPS = 1e-5      # PyTorch GroupNorm default eps
GROUPS = 4      # GroupNorm(4, out_channels)


def _round_up(v, m):
    return (v + m - 1) // m * m


# ------------------------------ kernel --------------------------------------


def _make_resnet_kernel(H, W, cin, cout, groups, n_out, npad, use_res_conv):
    """Fused (conv3x3+GN+SiLU) x2 + time-emb + residual for one image.

    Layout: channels on sublanes, flat padded spatial on lanes.  Conv outputs
    live on an (H, W+2) grid padded to n_out (multiple of 128) lanes; lanes
    with column >= W or index >= H*(W+2) are garbage, are masked out of the
    GroupNorm statistics and of the stage-2 input, and are dropped on host.
    """
    wp = W + 2
    cpg = cout // groups
    inv_count = 1.0 / float(H * W * cpg)
    pad_off = wp + 1                     # flat offset of pixel (0,0) in a padded image
    offsets = [ky * wp + kx for ky in range(3) for kx in range(3)]

    def kernel(*refs):
        if use_res_conv:
            (xpad_ref, xres_ref, valid_ref, gsel_ref,
             w1_ref, b1_ref, g1_ref, be1_ref, temb_ref,
             w2_ref, b2_ref, g2_ref, be2_ref, rw_ref, rb_ref,
             o_ref, hpad_ref) = refs
        else:
            (xpad_ref, xres_ref, valid_ref, gsel_ref,
             w1_ref, b1_ref, g1_ref, be1_ref, temb_ref,
             w2_ref, b2_ref, g2_ref, be2_ref,
             o_ref, hpad_ref) = refs

        valid = valid_ref[...]                                  # (1, n_out) f32

        def stacked_taps(read_tap):
            # One (9*C, n_out) bf16 operand: the 9 shifted taps stacked along
            # sublanes (the contraction axis) -> a single MXU matmul per conv.
            return jnp.concatenate([read_tap(o) for o in offsets], axis=0)

        def gn_silu(h_pre, gamma, beta):
            # GroupNorm over valid pixels x channels-per-group, then SiLU.
            am = h_pre * valid                                   # mask once
            s1 = jnp.sum(am, axis=1, keepdims=True)              # (C, 1)
            s2 = jnp.sum(am * am, axis=1, keepdims=True)         # (C, 1)
            mean = jnp.zeros((cout, 1), jnp.float32)
            mean_sq = jnp.zeros((cout, 1), jnp.float32)
            for g in range(groups):
                sel = gsel_ref[g]                                # (C, 1) one-hot
                mean += sel * (jnp.sum(sel * s1, keepdims=True) * inv_count)
                mean_sq += sel * (jnp.sum(sel * s2, keepdims=True) * inv_count)
            var = jnp.maximum(mean_sq - mean * mean, 0.0)
            h = (h_pre - mean) * (lax.rsqrt(var + EPS) * gamma) + beta
            return h * jax.nn.sigmoid(h)

        # ---- stage 1: conv3x3 + GroupNorm + SiLU + time embedding ----------
        t1 = stacked_taps(lambda o: xpad_ref[0, :, o:o + n_out])    # (9*Cin, n_out)
        acc1 = jnp.dot(w1_ref[...], t1, preferred_element_type=jnp.float32)
        h1 = gn_silu(acc1 + b1_ref[...], g1_ref[...], be1_ref[...]) + temb_ref[0]

        # Re-pad h1 inside VMEM for the second conv (never touches HBM).
        # Only the border lanes the masked center store does not cover need
        # explicit zeros: the top padded row + left pad of row 1 (head), and
        # the tail lanes reachable by the largest tap shift.
        hpad_ref[:, :pad_off] = jnp.zeros((cout, pad_off), hpad_ref.dtype)
        hpad_ref[:, pad_off + n_out:] = jnp.zeros(
            (cout, npad - pad_off - n_out), hpad_ref.dtype)
        hpad_ref[:, pad_off:pad_off + n_out] = (h1 * valid).astype(hpad_ref.dtype)

        # ---- stage 2: conv3x3 + GroupNorm + SiLU + residual add ------------
        t2 = stacked_taps(lambda o: hpad_ref[:, o:o + n_out])       # (9*Cout, n_out)
        acc2 = jnp.dot(w2_ref[...], t2, preferred_element_type=jnp.float32)
        h2 = gn_silu(acc2 + b2_ref[...], g2_ref[...], be2_ref[...])

        if use_res_conv:
            skip = jnp.dot(rw_ref[...], xres_ref[0].astype(jnp.bfloat16),
                           preferred_element_type=jnp.float32) + rb_ref[...]
        else:
            skip = xres_ref[0]                                   # exact f32 identity

        o_ref[0] = (h2 + skip).astype(o_ref.dtype)

    return kernel


# ----------------------------- host glue ------------------------------------


def resnet_block_apply(x, t, params):
    b, cin, h, w = x.shape
    cout = params["conv1_w"].shape[0]
    assert cout % GROUPS == 0, "out_channels must be divisible by GroupNorm groups"
    wp = w + 2
    n_img = h * wp                              # flat (H, W+2) grid
    n_out = _round_up(n_img, 128)               # lane-dense output block
    npad = _round_up(n_out + 2 * wp + 2, 128)   # room for the largest 3x3 tap shift
    use_res_conv = cin != cout

    # Zero-padded input image, flattened and lane-padded: (B, Cin, npad) bf16.
    xpad = jnp.pad(x, ((0, 0), (0, 0), (1, 1), (1, 1))).reshape(b, cin, (h + 2) * wp)
    xpad = jnp.pad(xpad, ((0, 0), (0, 0), (0, npad - (h + 2) * wp)))
    xpad = xpad.astype(jnp.bfloat16)

    # f32 residual feed in the kernel's output layout (lane j = y*(W+2) + x).
    xres = jnp.pad(x, ((0, 0), (0, 0), (0, 0), (0, 2))).reshape(b, cin, n_img)
    xres = jnp.pad(xres, ((0, 0), (0, 0), (0, n_out - n_img))).astype(jnp.float32)

    # Valid-pixel mask over the n_out flat lanes (cols >= W and padded lanes = 0).
    lanes = jnp.arange(n_out)
    valid = ((lanes < n_img) & (lanes % wp < w)).astype(jnp.float32).reshape(1, n_out)

    # One-hot group membership rows for the GroupNorm reductions.
    gid = jnp.arange(cout) // (cout // GROUPS)
    gsel = (gid[None, :] == jnp.arange(GROUPS)[:, None]).astype(jnp.float32)
    gsel = gsel.reshape(GROUPS, cout, 1)

    # Conv weights (Cout, Cin, 3, 3) -> (Cout, 9*Cin) with K index
    # (ky*3 + kx)*Cin + c to match the sublane-stacked taps in the kernel.
    w1 = jnp.transpose(params["conv1_w"], (0, 2, 3, 1)).reshape(cout, 9 * cin)
    w2 = jnp.transpose(params["conv2_w"], (0, 2, 3, 1)).reshape(cout, 9 * cout)
    w1 = w1.astype(jnp.bfloat16)
    w2 = w2.astype(jnp.bfloat16)
    b1 = params["conv1_b"].reshape(cout, 1)
    b2 = params["conv2_b"].reshape(cout, 1)
    g1 = params["gn1_g"].reshape(cout, 1)
    be1 = params["gn1_b"].reshape(cout, 1)
    g2 = params["gn2_g"].reshape(cout, 1)
    be2 = params["gn2_b"].reshape(cout, 1)

    # Time embedding hoisted out of the kernel: SiLU(t) @ W^T + b -> (B, Cout, 1).
    st = t * jax.nn.sigmoid(t)
    temb = (st @ params["time_w"].T + params["time_b"]).reshape(b, cout, 1)
    temb = temb.astype(jnp.float32)

    cvec = pl.BlockSpec((cout, 1), lambda i: (0, 0))
    in_specs = [
        pl.BlockSpec((1, cin, npad), lambda i: (i, 0, 0)),      # padded image
        pl.BlockSpec((1, cin, n_out), lambda i: (i, 0, 0)),     # f32 residual feed
        pl.BlockSpec((1, n_out), lambda i: (0, 0)),             # valid-pixel mask
        pl.BlockSpec((GROUPS, cout, 1), lambda i: (0, 0, 0)),   # group one-hots
        pl.BlockSpec((cout, 9 * cin), lambda i: (0, 0)),        # conv1 stacked weights
        cvec, cvec, cvec,                                       # b1, gamma1, beta1
        pl.BlockSpec((1, cout, 1), lambda i: (i, 0, 0)),        # time embedding row
        pl.BlockSpec((cout, 9 * cout), lambda i: (0, 0)),       # conv2 stacked weights
        cvec, cvec, cvec,                                       # b2, gamma2, beta2
    ]
    inputs = [xpad, xres, valid, gsel, w1, b1, g1, be1, temb, w2, b2, g2, be2]
    if use_res_conv:
        rw = params["res_w"][:, :, 0, 0].astype(jnp.bfloat16)   # (Cout, Cin)
        rb = params["res_b"].reshape(cout, 1)
        in_specs += [pl.BlockSpec((cout, cin), lambda i: (0, 0)), cvec]
        inputs += [rw, rb]

    # Right-sized VMEM request: double-buffered blocks + scratch + transients.
    bf2, f4 = 2, 4
    blk_bytes = (cin * npad * bf2 + cin * n_out * f4 + n_out * f4
                 + GROUPS * cout * f4
                 + cout * 9 * cin * bf2 + cout * 9 * cout * bf2
                 + 7 * cout * f4
                 + cout * n_out * f4)
    if use_res_conv:
        blk_bytes += cout * cin * bf2 + cout * f4
    scratch_bytes = cout * npad * bf2
    transient = (9 * cin + 9 * cout) * n_out * bf2 + 8 * cout * n_out * f4
    vmem_bytes = 2 * blk_bytes + scratch_bytes + 2 * transient + (8 << 20)
    vmem_bytes = min(max(_round_up(vmem_bytes, 1 << 20), 16 << 20), 64 << 20)

    kernel = _make_resnet_kernel(h, w, cin, cout, GROUPS, n_out, npad, use_res_conv)

    out_flat = pl.pallas_call(
        kernel,
        out_shape=jax.ShapeDtypeStruct((b, cout, n_out), jnp.float32),
        grid=(b,),
        in_specs=in_specs,
        out_specs=pl.BlockSpec((1, cout, n_out), lambda i: (i, 0, 0)),
        scratch_shapes=[pltpu.VMEM((cout, npad), jnp.bfloat16)],
        compiler_params=pltpu.CompilerParams(
            dimension_semantics=("parallel",),
            vmem_limit_bytes=vmem_bytes,
        ),
    )(*inputs)

    # Drop padded lanes and the 2 garbage columns per row; layout is NCHW.
    return out_flat[:, :, :n_img].reshape(b, cout, h, wp)[:, :, :, :w]


# ----------------------------- reference (pure JAX) --------------------------


def resnet_block_reference(x, t, params):
    HIGH = lax.Precision.HIGHEST

    def conv3x3(xx, wt, bias):
        y = lax.conv_general_dilated(
            xx, wt, (1, 1), ((1, 1), (1, 1)),
            dimension_numbers=("NCHW", "OIHW", "NCHW"), precision=HIGH)
        return y + bias[None, :, None, None]

    def groupnorm(xx, gamma, beta):
        bb, cc, hh, ww = xx.shape
        xg = xx.reshape(bb, GROUPS, cc // GROUPS, hh, ww)
        mean = xg.mean(axis=(2, 3, 4), keepdims=True)
        var = xg.var(axis=(2, 3, 4), keepdims=True)
        xn = ((xg - mean) / jnp.sqrt(var + EPS)).reshape(bb, cc, hh, ww)
        return xn * gamma[None, :, None, None] + beta[None, :, None, None]

    def silu(v):
        return v * jax.nn.sigmoid(v)

    cin = x.shape[1]
    cout = params["conv1_w"].shape[0]
    temb = jnp.dot(silu(t), params["time_w"].T, precision=HIGH) + params["time_b"]
    h = silu(groupnorm(conv3x3(x, params["conv1_w"], params["conv1_b"]),
                       params["gn1_g"], params["gn1_b"]))
    h = h + temb[:, :, None, None]
    h = silu(groupnorm(conv3x3(h, params["conv2_w"], params["conv2_b"]),
                       params["gn2_g"], params["gn2_b"]))
    if cin == cout:
        res = x
    else:
        res = lax.conv_general_dilated(
            x, params["res_w"], (1, 1), ((0, 0), (0, 0)),
            dimension_numbers=("NCHW", "OIHW", "NCHW"), precision=HIGH)
        res = res + params["res_b"][None, :, None, None]
    return h + res


# ----------------------------- params / main ---------------------------------


def init_params(key, cin, cout, tdim):
    ks = jax.random.split(key, 12)
    p = {
        "conv1_w": 0.1 * jax.random.normal(ks[0], (cout, cin, 3, 3), jnp.float32),
        "conv1_b": 0.1 * jax.random.normal(ks[1], (cout,), jnp.float32),
        "gn1_g": 1.0 + 0.1 * jax.random.normal(ks[2], (cout,), jnp.float32),
        "gn1_b": 0.1 * jax.random.normal(ks[3], (cout,), jnp.float32),
        "conv2_w": 0.1 * jax.random.normal(ks[4], (cout, cout, 3, 3), jnp.float32),
        "conv2_b": 0.1 * jax.random.normal(ks[5], (cout,), jnp.float32),
        "gn2_g": 1.0 + 0.1 * jax.random.normal(ks[6], (cout,), jnp.float32),
        "gn2_b": 0.1 * jax.random.normal(ks[7], (cout,), jnp.float32),
        "time_w": 0.1 * jax.random.normal(ks[8], (cout, tdim), jnp.float32),
        "time_b": 0.1 * jax.random.normal(ks[9], (cout,), jnp.float32),
    }
    if cin != cout:
        p["res_w"] = 0.1 * jax.random.normal(ks[10], (cout, cin, 1, 1), jnp.float32)
        p["res_b"] = 0.1 * jax.random.normal(ks[11], (cout,), jnp.float32)
    return p


if __name__ == "__main__":
    B, Cin, Cout, H, W, Tdim = 2, 4, 8, 16, 16, 32
    # bf16 MXU operands (f32 accumulation) vs f32 HIGHEST reference -> ~1e-2 err.
    TOL = 4e-2

    apply = jax.jit(resnet_block_apply)

    key = jax.random.PRNGKey(0)
    kx, kt, kp, k2x, k2p = jax.random.split(key, 5)
    t = jax.random.normal(kt, (B, Tdim), jnp.float32)

    # Case 1: in_channels != out_channels (1x1-conv residual path).
    x = jax.random.normal(kx, (B, Cin, H, W), jnp.float32)       # NCHW like PyTorch
    params = init_params(kp, Cin, Cout, Tdim)
    out = jax.block_until_ready(apply(x, t, params))
    ref = jax.block_until_ready(resnet_block_reference(x, t, params))
    assert out.shape == (B, Cout, H, W), out.shape
    assert jnp.allclose(out, ref, atol=TOL, rtol=TOL), \
        float(jnp.max(jnp.abs(out - ref)))

    # Case 2: in_channels == out_channels (identity residual, exact f32 add).
    x2 = jax.random.normal(k2x, (B, Cout, H, W), jnp.float32)
    params2 = init_params(k2p, Cout, Cout, Tdim)
    out2 = jax.block_until_ready(apply(x2, t, params2))
    ref2 = jax.block_until_ready(resnet_block_reference(x2, t, params2))
    assert out2.shape == (B, Cout, H, W), out2.shape
    assert jnp.allclose(out2, ref2, atol=TOL, rtol=TOL), \
        float(jnp.max(jnp.abs(out2 - ref2)))

    print("KERNEL_OK")
</pallas_src>

<mosaic_0001>
module attributes {stable_mosaic.version = 11 : i64} {
  func.func @kernel(%arg0: i32, %arg1: memref<1x4x512xbf16, #tpu.memory_space<vmem>>, %arg2: memref<1x4x384xf32, #tpu.memory_space<vmem>>, %arg3: memref<1x384xf32, #tpu.memory_space<vmem>>, %arg4: memref<4x8x1xf32, #tpu.memory_space<vmem>>, %arg5: memref<8x36xbf16, #tpu.memory_space<vmem>>, %arg6: memref<8x1xf32, #tpu.memory_space<vmem>>, %arg7: memref<8x1xf32, #tpu.memory_space<vmem>>, %arg8: memref<8x1xf32, #tpu.memory_space<vmem>>, %arg9: memref<1x8x1xf32, #tpu.memory_space<vmem>>, %arg10: memref<8x72xbf16, #tpu.memory_space<vmem>>, %arg11: memref<8x1xf32, #tpu.memory_space<vmem>>, %arg12: memref<8x1xf32, #tpu.memory_space<vmem>>, %arg13: memref<8x1xf32, #tpu.memory_space<vmem>>, %arg14: memref<8x4xbf16, #tpu.memory_space<vmem>>, %arg15: memref<8x1xf32, #tpu.memory_space<vmem>>, %arg16: memref<1x8x384xf32, #tpu.memory_space<vmem>>, %arg17: memref<8x512xbf16, #tpu.memory_space<vmem>>) attributes {dimension_semantics = [#tpu.dimension_semantics<parallel>], iteration_bounds = array<i64: 2>, scalar_prefetch = 0 : i64, scratch_operands = 1 : i64, tpu.core_type = #tpu.core_type<tc>, window_params = [{transform_indices = @transform_0, window_bounds = array<i64: 1, 4, 512>}, {transform_indices = @transform_1, window_bounds = array<i64: 1, 4, 384>}, {pipeline_mode = #tpu.pipeline_mode<synchronous>, transform_indices = @transform_2, window_bounds = array<i64: 1, 384>}, {pipeline_mode = #tpu.pipeline_mode<synchronous>, transform_indices = @transform_3, window_bounds = array<i64: 4, 8, 1>}, {pipeline_mode = #tpu.pipeline_mode<synchronous>, transform_indices = @transform_4, window_bounds = array<i64: 8, 36>}, {pipeline_mode = #tpu.pipeline_mode<synchronous>, transform_indices = @transform_5, window_bounds = array<i64: 8, 1>}, {pipeline_mode = #tpu.pipeline_mode<synchronous>, transform_indices = @transform_6, window_bounds = array<i64: 8, 1>}, {pipeline_mode = #tpu.pipeline_mode<synchronous>, transform_indices = @transform_7, window_bounds = array<i64: 8, 1>}, {transform_indices = @transform_8, window_bounds = array<i64: 1, 8, 1>}, {pipeline_mode = #tpu.pipeline_mode<synchronous>, transform_indices = @transform_9, window_bounds = array<i64: 8, 72>}, {pipeline_mode = #tpu.pipeline_mode<synchronous>, transform_indices = @transform_10, window_bounds = array<i64: 8, 1>}, {pipeline_mode = #tpu.pipeline_mode<synchronous>, transform_indices = @transform_11, window_bounds = array<i64: 8, 1>}, {pipeline_mode = #tpu.pipeline_mode<synchronous>, transform_indices = @transform_12, window_bounds = array<i64: 8, 1>}, {pipeline_mode = #tpu.pipeline_mode<synchronous>, transform_indices = @transform_13, window_bounds = array<i64: 8, 4>}, {pipeline_mode = #tpu.pipeline_mode<synchronous>, transform_indices = @transform_14, window_bounds = array<i64: 8, 1>}, {transform_indices = @transform_15, window_bounds = array<i64: 1, 8, 384>}]} {
    %c0 = arith.constant 0 : index
    %c0_0 = arith.constant 0 : index
    %0 = vector.load %arg3[%c0, %c0_0] : memref<1x384xf32, #tpu.memory_space<vmem>>, vector<1x384xf32>
    %c0_1 = arith.constant 0 : index
    %c0_2 = arith.constant 0 : index
    %c0_3 = arith.constant 0 : index
    %1 = vector.load %arg1[%c0_1, %c0_2, %c0_3] : memref<1x4x512xbf16, #tpu.memory_space<vmem>>, vector<1x4x384xbf16>
    %2 = vector.shape_cast %1 : vector<1x4x384xbf16> to vector<4x384xbf16>
    %c0_4 = arith.constant 0 : index
    %c0_5 = arith.constant 0 : index
    %c1 = arith.constant 1 : index
    %3 = vector.load %arg1[%c0_4, %c0_5, %c1] : memref<1x4x512xbf16, #tpu.memory_space<vmem>>, vector<1x4x384xbf16>
    %4 = vector.shape_cast %3 : vector<1x4x384xbf16> to vector<4x384xbf16>
    %c0_6 = arith.constant 0 : index
    %c0_7 = arith.constant 0 : index
    %c2 = arith.constant 2 : index
    %5 = vector.load %arg1[%c0_6, %c0_7, %c2] : memref<1x4x512xbf16, #tpu.memory_space<vmem>>, vector<1x4x384xbf16>
    %6 = vector.shape_cast %5 : vector<1x4x384xbf16> to vector<4x384xbf16>
    %c0_8 = arith.constant 0 : index
    %c0_9 = arith.constant 0 : index
    %c18 = arith.constant 18 : index
    %7 = vector.load %arg1[%c0_8, %c0_9, %c18] : memref<1x4x512xbf16, #tpu.memory_space<vmem>>, vector<1x4x384xbf16>
    %8 = vector.shape_cast %7 : vector<1x4x384xbf16> to vector<4x384xbf16>
    %c0_10 = arith.constant 0 : index
    %c0_11 = arith.constant 0 : index
    %c19 = arith.constant 19 : index
    %9 = vector.load %arg1[%c0_10, %c0_11, %c19] : memref<1x4x512xbf16, #tpu.memory_space<vmem>>, vector<1x4x384xbf16>
    %10 = vector.shape_cast %9 : vector<1x4x384xbf16> to vector<4x384xbf16>
    %c0_12 = arith.constant 0 : index
    %c0_13 = arith.constant 0 : index
    %c20 = arith.constant 20 : index
    %11 = vector.load %arg1[%c0_12, %c0_13, %c20] : memref<1x4x512xbf16, #tpu.memory_space<vmem>>, vector<1x4x384xbf16>
    %12 = vector.shape_cast %11 : vector<1x4x384xbf16> to vector<4x384xbf16>
    %c0_14 = arith.constant 0 : index
    %c0_15 = arith.constant 0 : index
    %c36 = arith.constant 36 : index
    %13 = vector.load %arg1[%c0_14, %c0_15, %c36] : memref<1x4x512xbf16, #tpu.memory_space<vmem>>, vector<1x4x384xbf16>
    %14 = vector.shape_cast %13 : vector<1x4x384xbf16> to vector<4x384xbf16>
    %c0_16 = arith.constant 0 : index
    %c0_17 = arith.constant 0 : index
    %c37 = arith.constant 37 : index
    %15 = vector.load %arg1[%c0_16, %c0_17, %c37] : memref<1x4x512xbf16, #tpu.memory_space<vmem>>, vector<1x4x384xbf16>
    %16 = vector.shape_cast %15 : vector<1x4x384xbf16> to vector<4x384xbf16>
    %c0_18 = arith.constant 0 : index
    %c0_19 = arith.constant 0 : index
    %c38 = arith.constant 38 : index
    %17 = vector.load %arg1[%c0_18, %c0_19, %c38] : memref<1x4x512xbf16, #tpu.memory_space<vmem>>, vector<1x4x384xbf16>
    %18 = vector.shape_cast %17 : vector<1x4x384xbf16> to vector<4x384xbf16>
    %19 = tpu.concatenate %2, %4, %6, %8, %10, %12, %14, %16, %18 in 0 : vector<4x384xbf16>, vector<4x384xbf16>, vector<4x384xbf16>, vector<4x384xbf16>, vector<4x384xbf16>, vector<4x384xbf16>, vector<4x384xbf16>, vector<4x384xbf16>, vector<4x384xbf16> -> vector<36x384xbf16>
    %c0_20 = arith.constant 0 : index
    %c0_21 = arith.constant 0 : index
    %20 = vector.load %arg5[%c0_20, %c0_21] : memref<8x36xbf16, #tpu.memory_space<vmem>>, vector<8x36xbf16>
    %cst = arith.constant dense<0.000000e+00> : vector<8x384xf32>
    %21 = tpu.matmul %20, %19, %cst {dimension_numbers = #tpu.dot_dimension_numbers<[1], [0], [0], [1], [0, 0, 1, 1], [], []>} : vector<8x36xbf16>, vector<36x384xbf16>, vector<8x384xf32> -> vector<8x384xf32>
    %c0_22 = arith.constant 0 : index
    %c0_23 = arith.constant 0 : index
    %22 = vector.load %arg6[%c0_22, %c0_23] : memref<8x1xf32, #tpu.memory_space<vmem>>, vector<8x1xf32>
    %23 = vector.broadcast %22 : vector<8x1xf32> to vector<8x384xf32>
    %24 = arith.addf %21, %23 : vector<8x384xf32>
    %c0_24 = arith.constant 0 : index
    %c0_25 = arith.constant 0 : index
    %25 = vector.load %arg7[%c0_24, %c0_25] : memref<8x1xf32, #tpu.memory_space<vmem>>, vector<8x1xf32>
    %c0_26 = arith.constant 0 : index
    %c0_27 = arith.constant 0 : index
    %26 = vector.load %arg8[%c0_26, %c0_27] : memref<8x1xf32, #tpu.memory_space<vmem>>, vector<8x1xf32>
    %27 = vector.broadcast %0 : vector<1x384xf32> to vector<8x384xf32>
    %28 = arith.mulf %24, %27 : vector<8x384xf32>
    %cst_28 = arith.constant dense<0.000000e+00> : vector<8xf32>
    %29 = vector.multi_reduction <add>, %28, %cst_28 [1] : vector<8x384xf32> to vector<8xf32>
    %30 = vector.shape_cast %29 : vector<8xf32> to vector<8x1xf32>
    %31 = arith.mulf %28, %28 : vector<8x384xf32>
    %cst_29 = arith.constant dense<0.000000e+00> : vector<8xf32>
    %32 = vector.multi_reduction <add>, %31, %cst_29 [1] : vector<8x384xf32> to vector<8xf32>
    %33 = vector.shape_cast %32 : vector<8xf32> to vector<8x1xf32>
    %cst_30 = arith.constant 0.000000e+00 : f32
    %34 = vector.broadcast %cst_30 : f32 to vector<8x1xf32>
    %cst_31 = arith.constant 0.000000e+00 : f32
    %35 = vector.broadcast %cst_31 : f32 to vector<8x1xf32>
    %c0_32 = arith.constant 0 : index
    %c0_33 = arith.constant 0 : index
    %c0_34 = arith.constant 0 : index
    %36 = vector.load %arg4[%c0_32, %c0_33, %c0_34] : memref<4x8x1xf32, #tpu.memory_space<vmem>>, vector<1x8x1xf32>
    %37 = vector.shape_cast %36 : vector<1x8x1xf32> to vector<8x1xf32>
    %38 = arith.mulf %37, %30 : vector<8x1xf32>
    %39 = vector.shape_cast %38 : vector<8x1xf32> to vector<1x8x1xf32>
    %cst_35 = arith.constant dense<0.000000e+00> : vector<1xf32>
    %40 = vector.multi_reduction <add>, %39, %cst_35 [1, 2] : vector<1x8x1xf32> to vector<1xf32>
    %41 = vector.shape_cast %40 : vector<1xf32> to vector<1x1x1xf32>
    %42 = vector.extract %41[0, 0, 0] : f32 from vector<1x1x1xf32>
    %43 = vector.broadcast %42 : f32 to vector<1x1xf32>
    %cst_36 = arith.constant 0.001953125 : f32
    %44 = vector.broadcast %cst_36 : f32 to vector<1x1xf32>
    %45 = arith.mulf %43, %44 : vector<1x1xf32>
    %46 = vector.broadcast %45 : vector<1x1xf32> to vector<8x1xf32>
    %47 = arith.mulf %37, %46 : vector<8x1xf32>
    %48 = arith.addf %34, %47 : vector<8x1xf32>
    %49 = arith.mulf %37, %33 : vector<8x1xf32>
    %50 = vector.shape_cast %49 : vector<8x1xf32> to vector<1x8x1xf32>
    %cst_37 = arith.constant dense<0.000000e+00> : vector<1xf32>
    %51 = vector.multi_reduction <add>, %50, %cst_37 [1, 2] : vector<1x8x1xf32> to vector<1xf32>
    %52 = vector.shape_cast %51 : vector<1xf32> to vector<1x1x1xf32>
    %53 = vector.extract %52[0, 0, 0] : f32 from vector<1x1x1xf32>
    %54 = vector.broadcast %53 : f32 to vector<1x1xf32>
    %cst_38 = arith.constant 0.001953125 : f32
    %55 = vector.broadcast %cst_38 : f32 to vector<1x1xf32>
    %56 = arith.mulf %54, %55 : vector<1x1xf32>
    %57 = vector.broadcast %56 : vector<1x1xf32> to vector<8x1xf32>
    %58 = arith.mulf %37, %57 : vector<8x1xf32>
    %59 = arith.addf %35, %58 : vector<8x1xf32>
    %c1_39 = arith.constant 1 : index
    %c0_40 = arith.constant 0 : index
    %c0_41 = arith.constant 0 : index
    %60 = vector.load %arg4[%c1_39, %c0_40, %c0_41] : memref<4x8x1xf32, #tpu.memory_space<vmem>>, vector<1x8x1xf32>
    %61 = vector.shape_cast %60 : vector<1x8x1xf32> to vector<8x1xf32>
    %62 = arith.mulf %61, %30 : vector<8x1xf32>
    %63 = vector.shape_cast %62 : vector<8x1xf32> to vector<1x8x1xf32>
    %cst_42 = arith.constant dense<0.000000e+00> : vector<1xf32>
    %64 = vector.multi_reduction <add>, %63, %cst_42 [1, 2] : vector<1x8x1xf32> to vector<1xf32>
    %65 = vector.shape_cast %64 : vector<1xf32> to vector<1x1x1xf32>
    %66 = vector.extract %65[0, 0, 0] : f32 from vector<1x1x1xf32>
    %67 = vector.broadcast %66 : f32 to vector<1x1xf32>
    %cst_43 = arith.constant 0.001953125 : f32
    %68 = vector.broadcast %cst_43 : f32 to vector<1x1xf32>
    %69 = arith.mulf %67, %68 : vector<1x1xf32>
    %70 = vector.broadcast %69 : vector<1x1xf32> to vector<8x1xf32>
    %71 = arith.mulf %61, %70 : vector<8x1xf32>
    %72 = arith.addf %48, %71 : vector<8x1xf32>
    %73 = arith.mulf %61, %33 : vector<8x1xf32>
    %74 = vector.shape_cast %73 : vector<8x1xf32> to vector<1x8x1xf32>
    %cst_44 = arith.constant dense<0.000000e+00> : vector<1xf32>
    %75 = vector.multi_reduction <add>, %74, %cst_44 [1, 2] : vector<1x8x1xf32> to vector<1xf32>
    %76 = vector.shape_cast %75 : vector<1xf32> to vector<1x1x1xf32>
    %77 = vector.extract %76[0, 0, 0] : f32 from vector<1x1x1xf32>
    %78 = vector.broadcast %77 : f32 to vector<1x1xf32>
    %cst_45 = arith.constant 0.001953125 : f32
    %79 = vector.broadcast %cst_45 : f32 to vector<1x1xf32>
    %80 = arith.mulf %78, %79 : vector<1x1xf32>
    %81 = vector.broadcast %80 : vector<1x1xf32> to vector<8x1xf32>
    %82 = arith.mulf %61, %81 : vector<8x1xf32>
    %83 = arith.addf %59, %82 : vector<8x1xf32>
    %c2_46 = arith.constant 2 : index
    %c0_47 = arith.constant 0 : index
    %c0_48 = arith.constant 0 : index
    %84 = vector.load %arg4[%c2_46, %c0_47, %c0_48] : memref<4x8x1xf32, #tpu.memory_space<vmem>>, vector<1x8x1xf32>
    %85 = vector.shape_cast %84 : vector<1x8x1xf32> to vector<8x1xf32>
    %86 = arith.mulf %85, %30 : vector<8x1xf32>
    %87 = vector.shape_cast %86 : vector<8x1xf32> to vector<1x8x1xf32>
    %cst_49 = arith.constant dense<0.000000e+00> : vector<1xf32>
    %88 = vector.multi_reduction <add>, %87, %cst_49 [1, 2] : vector<1x8x1xf32> to vector<1xf32>
    %89 = vector.shape_cast %88 : vector<1xf32> to vector<1x1x1xf32>
    %90 = vector.extract %89[0, 0, 0] : f32 from vector<1x1x1xf32>
    %91 = vector.broadcast %90 : f32 to vector<1x1xf32>
    %cst_50 = arith.constant 0.001953125 : f32
    %92 = vector.broadcast %cst_50 : f32 to vector<1x1xf32>
    %93 = arith.mulf %91, %92 : vector<1x1xf32>
    %94 = vector.broadcast %93 : vector<1x1xf32> to vector<8x1xf32>
    %95 = arith.mulf %85, %94 : vector<8x1xf32>
    %96 = arith.addf %72, %95 : vector<8x1xf32>
    %97 = arith.mulf %85, %33 : vector<8x1xf32>
    %98 = vector.shape_cast %97 : vector<8x1xf32> to vector<1x8x1xf32>
    %cst_51 = arith.constant dense<0.000000e+00> : vector<1xf32>
    %99 = vector.multi_reduction <add>, %98, %cst_51 [1, 2] : vector<1x8x1xf32> to vector<1xf32>
    %100 = vector.shape_cast %99 : vector<1xf32> to vector<1x1x1xf32>
    %101 = vector.extract %100[0, 0, 0] : f32 from vector<1x1x1xf32>
    %102 = vector.broadcast %101 : f32 to vector<1x1xf32>
    %cst_52 = arith.constant 0.001953125 : f32
    %103 = vector.broadcast %cst_52 : f32 to vector<1x1xf32>
    %104 = arith.mulf %102, %103 : vector<1x1xf32>
    %105 = vector.broadcast %104 : vector<1x1xf32> to vector<8x1xf32>
    %106 = arith.mulf %85, %105 : vector<8x1xf32>
    %107 = arith.addf %83, %106 : vector<8x1xf32>
    %c3 = arith.constant 3 : index
    %c0_53 = arith.constant 0 : index
    %c0_54 = arith.constant 0 : index
    %108 = vector.load %arg4[%c3, %c0_53, %c0_54] : memref<4x8x1xf32, #tpu.memory_space<vmem>>, vector<1x8x1xf32>
    %109 = vector.shape_cast %108 : vector<1x8x1xf32> to vector<8x1xf32>
    %110 = arith.mulf %109, %30 : vector<8x1xf32>
    %111 = vector.shape_cast %110 : vector<8x1xf32> to vector<1x8x1xf32>
    %cst_55 = arith.constant dense<0.000000e+00> : vector<1xf32>
    %112 = vector.multi_reduction <add>, %111, %cst_55 [1, 2] : vector<1x8x1xf32> to vector<1xf32>
    %113 = vector.shape_cast %112 : vector<1xf32> to vector<1x1x1xf32>
    %114 = vector.extract %113[0, 0, 0] : f32 from vector<1x1x1xf32>
    %115 = vector.broadcast %114 : f32 to vector<1x1xf32>
    %cst_56 = arith.constant 0.001953125 : f32
    %116 = vector.broadcast %cst_56 : f32 to vector<1x1xf32>
    %117 = arith.mulf %115, %116 : vector<1x1xf32>
    %118 = vector.broadcast %117 : vector<1x1xf32> to vector<8x1xf32>
    %119 = arith.mulf %109, %118 : vector<8x1xf32>
    %120 = arith.addf %96, %119 : vector<8x1xf32>
    %121 = arith.mulf %109, %33 : vector<8x1xf32>
    %122 = vector.shape_cast %121 : vector<8x1xf32> to vector<1x8x1xf32>
    %cst_57 = arith.constant dense<0.000000e+00> : vector<1xf32>
    %123 = vector.multi_reduction <add>, %122, %cst_57 [1, 2] : vector<1x8x1xf32> to vector<1xf32>
    %124 = vector.shape_cast %123 : vector<1xf32> to vector<1x1x1xf32>
    %125 = vector.extract %124[0, 0, 0] : f32 from vector<1x1x1xf32>
    %126 = vector.broadcast %125 : f32 to vector<1x1xf32>
    %cst_58 = arith.constant 0.001953125 : f32
    %127 = vector.broadcast %cst_58 : f32 to vector<1x1xf32>
    %128 = arith.mulf %126, %127 : vector<1x1xf32>
    %129 = vector.broadcast %128 : vector<1x1xf32> to vector<8x1xf32>
    %130 = arith.mulf %109, %129 : vector<8x1xf32>
    %131 = arith.addf %107, %130 : vector<8x1xf32>
    %132 = arith.mulf %120, %120 : vector<8x1xf32>
    %133 = arith.subf %131, %132 : vector<8x1xf32>
    %cst_59 = arith.constant 0.000000e+00 : f32
    %134 = vector.broadcast %cst_59 : f32 to vector<8x1xf32>
    %135 = arith.maximumf %133, %134 : vector<8x1xf32>
    %136 = vector.broadcast %120 : vector<8x1xf32> to vector<8x384xf32>
    %137 = arith.subf %24, %136 : vector<8x384xf32>
    %cst_60 = arith.constant 9.99999974E-6 : f32
    %138 = vector.broadcast %cst_60 : f32 to vector<8x1xf32>
    %139 = arith.addf %135, %138 : vector<8x1xf32>
    %140 = math.rsqrt %139 : vector<8x1xf32>
    %141 = arith.mulf %140, %25 : vector<8x1xf32>
    %142 = vector.broadcast %141 : vector<8x1xf32> to vector<8x384xf32>
    %143 = arith.mulf %137, %142 : vector<8x384xf32>
    %144 = vector.broadcast %26 : vector<8x1xf32> to vector<8x384xf32>
    %145 = arith.addf %143, %144 : vector<8x384xf32>
    %146 = arith.negf %145 : vector<8x384xf32>
    %147 = math.exp %146 : vector<8x384xf32>
    %cst_61 = arith.constant 1.000000e+00 : f32
    %148 = vector.broadcast %cst_61 : f32 to vector<8x384xf32>
    %149 = arith.addf %148, %147 : vector<8x384xf32>
    %150 = arith.divf %148, %149 : vector<8x384xf32>
    %151 = arith.mulf %145, %150 : vector<8x384xf32>
    %c0_62 = arith.constant 0 : index
    %c0_63 = arith.constant 0 : index
    %c0_64 = arith.constant 0 : index
    %152 = vector.load %arg9[%c0_62, %c0_63, %c0_64] : memref<1x8x1xf32, #tpu.memory_space<vmem>>, vector<1x8x1xf32>
    %153 = vector.shape_cast %152 : vector<1x8x1xf32> to vector<8x1xf32>
    %154 = vector.broadcast %153 : vector<8x1xf32> to vector<8x384xf32>
    %155 = arith.addf %151, %154 : vector<8x384xf32>
    %cst_65 = arith.constant 0.000000e+00 : bf16
    %156 = vector.broadcast %cst_65 : bf16 to vector<8x19xbf16>
    %c0_66 = arith.constant 0 : index
    %c0_67 = arith.constant 0 : index
    %157 = vector.load %arg17[%c0_66, %c0_67] : memref<8x512xbf16, #tpu.memory_space<vmem>>, vector<8x19xbf16>
    tpu.vector_store %arg17[%c0_66, %c0_67], %156 {strides = array<i32>} : memref<8x512xbf16, #tpu.memory_space<vmem>>, vector<8x19xbf16>,
    %cst_68 = arith.constant 0.000000e+00 : bf16
    %158 = vector.broadcast %cst_68 : bf16 to vector<8x109xbf16>
    %c0_69 = arith.constant 0 : index
    %c403 = arith.constant 403 : index
    %159 = vector.load %arg17[%c0_69, %c403] : memref<8x512xbf16, #tpu.memory_space<vmem>>, vector<8x109xbf16>
    tpu.vector_store %arg17[%c0_69, %c403], %158 {strides = array<i32>} : memref<8x512xbf16, #tpu.memory_space<vmem>>, vector<8x109xbf16>,
    %160 = vector.broadcast %0 : vector<1x384xf32> to vector<8x384xf32>
    %161 = arith.mulf %155, %160 : vector<8x384xf32>
    %162 = arith.truncf %161 : vector<8x384xf32> to vector<8x384xbf16>
    %c0_70 = arith.constant 0 : index
    %c19_71 = arith.constant 19 : index
    %163 = vector.load %arg17[%c0_70, %c19_71] : memref<8x512xbf16, #tpu.memory_space<vmem>>, vector<8x384xbf16>
    tpu.vector_store %arg17[%c0_70, %c19_71], %162 {strides = array<i32>} : memref<8x512xbf16, #tpu.memory_space<vmem>>, vector<8x384xbf16>,
    %c0_72 = arith.constant 0 : index
    %c0_73 = arith.constant 0 : index
    %164 = vector.load %arg17[%c0_72, %c0_73] : memref<8x512xbf16, #tpu.memory_space<vmem>>, vector<8x384xbf16>
    %c0_74 = arith.constant 0 : index
    %c1_75 = arith.constant 1 : index
    %165 = vector.load %arg17[%c0_74, %c1_75] : memref<8x512xbf16, #tpu.memory_space<vmem>>, vector<8x384xbf16>
    %c0_76 = arith.constant 0 : index
    %c2_77 = arith.constant 2 : index
    %166 = vector.load %arg17[%c0_76, %c2_77] : memref<8x512xbf16, #tpu.memory_space<vmem>>, vector<8x384xbf16>
    %c0_78 = arith.constant 0 : index
    %c18_79 = arith.constant 18 : index
    %167 = vector.load %arg17[%c0_78, %c18_79] : memref<8x512xbf16, #tpu.memory_space<vmem>>, vector<8x384xbf16>
    %c0_80 = arith.constant 0 : index
    %c19_81 = arith.constant 19 : index
    %168 = vector.load %arg17[%c0_80, %c19_81] : memref<8x512xbf16, #tpu.memory_space<vmem>>, vector<8x384xbf16>
    %c0_82 = arith.constant 0 : index
    %c20_83 = arith.constant 20 : index
    %169 = vector.load %arg17[%c0_82, %c20_83] : memref<8x512xbf16, #tpu.memory_space<vmem>>, vector<8x384xbf16>
    %c0_84 = arith.constant 0 : index
    %c36_85 = arith.constant 36 : index
    %170 = vector.load %arg17[%c0_84, %c36_85] : memref<8x512xbf16, #tpu.memory_space<vmem>>, vector<8x384xbf16>
    %c0_86 = arith.constant 0 : index
    %c37_87 = arith.constant 37 : index
    %171 = vector.load %arg17[%c0_86, %c37_87] : memref<8x512xbf16, #tpu.memory_space<vmem>>, vector<8x384xbf16>
    %c0_88 = arith.constant 0 : index
    %c38_89 = arith.constant 38 : index
    %172 = vector.load %arg17[%c0_88, %c38_89] : memref<8x512xbf16, #tpu.memory_space<vmem>>, vector<8x384xbf16>
    %173 = tpu.concatenate %164, %165, %166, %167, %168, %169, %170, %171, %172 in 0 : vector<8x384xbf16>, vector<8x384xbf16>, vector<8x384xbf16>, vector<8x384xbf16>, vector<8x384xbf16>, vector<8x384xbf16>, vector<8x384xbf16>, vector<8x384xbf16>, vector<8x384xbf16> -> vector<72x384xbf16>
    %c0_90 = arith.constant 0 : index
    %c0_91 = arith.constant 0 : index
    %174 = vector.load %arg10[%c0_90, %c0_91] : memref<8x72xbf16, #tpu.memory_space<vmem>>, vector<8x72xbf16>
    %cst_92 = arith.constant dense<0.000000e+00> : vector<8x384xf32>
    %175 = tpu.matmul %174, %173, %cst_92 {dimension_numbers = #tpu.dot_dimension_numbers<[1], [0], [0], [1], [0, 0, 1, 1], [], []>} : vector<8x72xbf16>, vector<72x384xbf16>, vector<8x384xf32> -> vector<8x384xf32>
    %c0_93 = arith.constant 0 : index
    %c0_94 = arith.constant 0 : index
    %176 = vector.load %arg11[%c0_93, %c0_94] : memref<8x1xf32, #tpu.memory_space<vmem>>, vector<8x1xf32>
    %177 = vector.broadcast %176 : vector<8x1xf32> to vector<8x384xf32>
    %178 = arith.addf %175, %177 : vector<8x384xf32>
    %c0_95 = arith.constant 0 : index
    %c0_96 = arith.constant 0 : index
    %179 = vector.load %arg12[%c0_95, %c0_96] : memref<8x1xf32, #tpu.memory_space<vmem>>, vector<8x1xf32>
    %c0_97 = arith.constant 0 : index
    %c0_98 = arith.constant 0 : index
    %180 = vector.load %arg13[%c0_97, %c0_98] : memref<8x1xf32, #tpu.memory_space<vmem>>, vector<8x1xf32>
    %181 = vector.broadcast %0 : vector<1x384xf32> to vector<8x384xf32>
    %182 = arith.mulf %178, %181 : vector<8x384xf32>
    %cst_99 = arith.constant dense<0.000000e+00> : vector<8xf32>
    %183 = vector.multi_reduction <add>, %182, %cst_99 [1] : vector<8x384xf32> to vector<8xf32>
    %184 = vector.shape_cast %183 : vector<8xf32> to vector<8x1xf32>
    %185 = arith.mulf %182, %182 : vector<8x384xf32>
    %cst_100 = arith.constant dense<0.000000e+00> : vector<8xf32>
    %186 = vector.multi_reduction <add>, %185, %cst_100 [1] : vector<8x384xf32> to vector<8xf32>
    %187 = vector.shape_cast %186 : vector<8xf32> to vector<8x1xf32>
    %cst_101 = arith.constant 0.000000e+00 : f32
    %188 = vector.broadcast %cst_101 : f32 to vector<8x1xf32>
    %cst_102 = arith.constant 0.000000e+00 : f32
    %189 = vector.broadcast %cst_102 : f32 to vector<8x1xf32>
    %c0_103 = arith.constant 0 : index
    %c0_104 = arith.constant 0 : index
    %c0_105 = arith.constant 0 : index
    %190 = vector.load %arg4[%c0_103, %c0_104, %c0_105] : memref<4x8x1xf32, #tpu.memory_space<vmem>>, vector<1x8x1xf32>
    %191 = vector.shape_cast %190 : vector<1x8x1xf32> to vector<8x1xf32>
    %192 = arith.mulf %191, %184 : vector<8x1xf32>
    %193 = vector.shape_cast %192 : vector<8x1xf32> to vector<1x8x1xf32>
    %cst_106 = arith.constant dense<0.000000e+00> : vector<1xf32>
    %194 = vector.multi_reduction <add>, %193, %cst_106 [1, 2] : vector<1x8x1xf32> to vector<1xf32>
    %195 = vector.shape_cast %194 : vector<1xf32> to vector<1x1x1xf32>
    %196 = vector.extract %195[0, 0, 0] : f32 from vector<1x1x1xf32>
    %197 = vector.broadcast %196 : f32 to vector<1x1xf32>
    %cst_107 = arith.constant 0.001953125 : f32
    %198 = vector.broadcast %cst_107 : f32 to vector<1x1xf32>
    %199 = arith.mulf %197, %198 : vector<1x1xf32>
    %200 = vector.broadcast %199 : vector<1x1xf32> to vector<8x1xf32>
    %201 = arith.mulf %191, %200 : vector<8x1xf32>
    %202 = arith.addf %188, %201 : vector<8x1xf32>
    %203 = arith.mulf %191, %187 : vector<8x1xf32>
    %204 = vector.shape_cast %203 : vector<8x1xf32> to vector<1x8x1xf32>
    %cst_108 = arith.constant dense<0.000000e+00> : vector<1xf32>
    %205 = vector.multi_reduction <add>, %204, %cst_108 [1, 2] : vector<1x8x1xf32> to vector<1xf32>
    %206 = vector.shape_cast %205 : vector<1xf32> to vector<1x1x1xf32>
    %207 = vector.extract %206[0, 0, 0] : f32 from vector<1x1x1xf32>
    %208 = vector.broadcast %207 : f32 to vector<1x1xf32>
    %cst_109 = arith.constant 0.001953125 : f32
    %209 = vector.broadcast %cst_109 : f32 to vector<1x1xf32>
    %210 = arith.mulf %208, %209 : vector<1x1xf32>
    %211 = vector.broadcast %210 : vector<1x1xf32> to vector<8x1xf32>
    %212 = arith.mulf %191, %211 : vector<8x1xf32>
    %213 = arith.addf %189, %212 : vector<8x1xf32>
    %c1_110 = arith.constant 1 : index
    %c0_111 = arith.constant 0 : index
    %c0_112 = arith.constant 0 : index
    %214 = vector.load %arg4[%c1_110, %c0_111, %c0_112] : memref<4x8x1xf32, #tpu.memory_space<vmem>>, vector<1x8x1xf32>
    %215 = vector.shape_cast %214 : vector<1x8x1xf32> to vector<8x1xf32>
    %216 = arith.mulf %215, %184 : vector<8x1xf32>
    %217 = vector.shape_cast %216 : vector<8x1xf32> to vector<1x8x1xf32>
    %cst_113 = arith.constant dense<0.000000e+00> : vector<1xf32>
    %218 = vector.multi_reduction <add>, %217, %cst_113 [1, 2] : vector<1x8x1xf32> to vector<1xf32>
    %219 = vector.shape_cast %218 : vector<1xf32> to vector<1x1x1xf32>
    %220 = vector.extract %219[0, 0, 0] : f32 from vector<1x1x1xf32>
    %221 = vector.broadcast %220 : f32 to vector<1x1xf32>
    %cst_114 = arith.constant 0.001953125 : f32
    %222 = vector.broadcast %cst_114 : f32 to vector<1x1xf32>
    %223 = arith.mulf %221, %222 : vector<1x1xf32>
    %224 = vector.broadcast %223 : vector<1x1xf32> to vector<8x1xf32>
    %225 = arith.mulf %215, %224 : vector<8x1xf32>
    %226 = arith.addf %202, %225 : vector<8x1xf32>
    %227 = arith.mulf %215, %187 : vector<8x1xf32>
    %228 = vector.shape_cast %227 : vector<8x1xf32> to vector<1x8x1xf32>
    %cst_115 = arith.constant dense<0.000000e+00> : vector<1xf32>
    %229 = vector.multi_reduction <add>, %228, %cst_115 [1, 2] : vector<1x8x1xf32> to vector<1xf32>
    %230 = vector.shape_cast %229 : vector<1xf32> to vector<1x1x1xf32>
    %231 = vector.extract %230[0, 0, 0] : f32 from vector<1x1x1xf32>
    %232 = vector.broadcast %231 : f32 to vector<1x1xf32>
    %cst_116 = arith.constant 0.001953125 : f32
    %233 = vector.broadcast %cst_116 : f32 to vector<1x1xf32>
    %234 = arith.mulf %232, %233 : vector<1x1xf32>
    %235 = vector.broadcast %234 : vector<1x1xf32> to vector<8x1xf32>
    %236 = arith.mulf %215, %235 : vector<8x1xf32>
    %237 = arith.addf %213, %236 : vector<8x1xf32>
    %c2_117 = arith.constant 2 : index
    %c0_118 = arith.constant 0 : index
    %c0_119 = arith.constant 0 : index
    %238 = vector.load %arg4[%c2_117, %c0_118, %c0_119] : memref<4x8x1xf32, #tpu.memory_space<vmem>>, vector<1x8x1xf32>
    %239 = vector.shape_cast %238 : vector<1x8x1xf32> to vector<8x1xf32>
    %240 = arith.mulf %239, %184 : vector<8x1xf32>
    %241 = vector.shape_cast %240 : vector<8x1xf32> to vector<1x8x1xf32>
    %cst_120 = arith.constant dense<0.000000e+00> : vector<1xf32>
    %242 = vector.multi_reduction <add>, %241, %cst_120 [1, 2] : vector<1x8x1xf32> to vector<1xf32>
    %243 = vector.shape_cast %242 : vector<1xf32> to vector<1x1x1xf32>
    %244 = vector.extract %243[0, 0, 0] : f32 from vector<1x1x1xf32>
    %245 = vector.broadcast %244 : f32 to vector<1x1xf32>
    %cst_121 = arith.constant 0.001953125 : f32
    %246 = vector.broadcast %cst_121 : f32 to vector<1x1xf32>
    %247 = arith.mulf %245, %246 : vector<1x1xf32>
    %248 = vector.broadcast %247 : vector<1x1xf32> to vector<8x1xf32>
    %249 = arith.mulf %239, %248 : vector<8x1xf32>
    %250 = arith.addf %226, %249 : vector<8x1xf32>
    %251 = arith.mulf %239, %187 : vector<8x1xf32>
    %252 = vector.shape_cast %251 : vector<8x1xf32> to vector<1x8x1xf32>
    %cst_122 = arith.constant dense<0.000000e+00> : vector<1xf32>
    %253 = vector.multi_reduction <add>, %252, %cst_122 [1, 2] : vector<1x8x1xf32> to vector<1xf32>
    %254 = vector.shape_cast %253 : vector<1xf32> to vector<1x1x1xf32>
    %255 = vector.extract %254[0, 0, 0] : f32 from vector<1x1x1xf32>
    %256 = vector.broadcast %255 : f32 to vector<1x1xf32>
    %cst_123 = arith.constant 0.001953125 : f32
    %257 = vector.broadcast %cst_123 : f32 to vector<1x1xf32>
    %258 = arith.mulf %256, %257 : vector<1x1xf32>
    %259 = vector.broadcast %258 : vector<1x1xf32> to vector<8x1xf32>
    %260 = arith.mulf %239, %259 : vector<8x1xf32>
    %261 = arith.addf %237, %260 : vector<8x1xf32>
    %c3_124 = arith.constant 3 : index
    %c0_125 = arith.constant 0 : index
    %c0_126 = arith.constant 0 : index
    %262 = vector.load %arg4[%c3_124, %c0_125, %c0_126] : memref<4x8x1xf32, #tpu.memory_space<vmem>>, vector<1x8x1xf32>
    %263 = vector.shape_cast %262 : vector<1x8x1xf32> to vector<8x1xf32>
    %264 = arith.mulf %263, %184 : vector<8x1xf32>
    %265 = vector.shape_cast %264 : vector<8x1xf32> to vector<1x8x1xf32>
    %cst_127 = arith.constant dense<0.000000e+00> : vector<1xf32>
    %266 = vector.multi_reduction <add>, %265, %cst_127 [1, 2] : vector<1x8x1xf32> to vector<1xf32>
    %267 = vector.shape_cast %266 : vector<1xf32> to vector<1x1x1xf32>
    %268 = vector.extract %267[0, 0, 0] : f32 from vector<1x1x1xf32>
    %269 = vector.broadcast %268 : f32 to vector<1x1xf32>
    %cst_128 = arith.constant 0.001953125 : f32
    %270 = vector.broadcast %cst_128 : f32 to vector<1x1xf32>
    %271 = arith.mulf %269, %270 : vector<1x1xf32>
    %272 = vector.broadcast %271 : vector<1x1xf32> to vector<8x1xf32>
    %273 = arith.mulf %263, %272 : vector<8x1xf32>
    %274 = arith.addf %250, %273 : vector<8x1xf32>
    %275 = arith.mulf %263, %187 : vector<8x1xf32>
    %276 = vector.shape_cast %275 : vector<8x1xf32> to vector<1x8x1xf32>
    %cst_129 = arith.constant dense<0.000000e+00> : vector<1xf32>
    %277 = vector.multi_reduction <add>, %276, %cst_129 [1, 2] : vector<1x8x1xf32> to vector<1xf32>
    %278 = vector.shape_cast %277 : vector<1xf32> to vector<1x1x1xf32>
    %279 = vector.extract %278[0, 0, 0] : f32 from vector<1x1x1xf32>
    %280 = vector.broadcast %279 : f32 to vector<1x1xf32>
    %cst_130 = arith.constant 0.001953125 : f32
    %281 = vector.broadcast %cst_130 : f32 to vector<1x1xf32>
    %282 = arith.mulf %280, %281 : vector<1x1xf32>
    %283 = vector.broadcast %282 : vector<1x1xf32> to vector<8x1xf32>
    %284 = arith.mulf %263, %283 : vector<8x1xf32>
    %285 = arith.addf %261, %284 : vector<8x1xf32>
    %286 = arith.mulf %274, %274 : vector<8x1xf32>
    %287 = arith.subf %285, %286 : vector<8x1xf32>
    %cst_131 = arith.constant 0.000000e+00 : f32
    %288 = vector.broadcast %cst_131 : f32 to vector<8x1xf32>
    %289 = arith.maximumf %287, %288 : vector<8x1xf32>
    %290 = vector.broadcast %274 : vector<8x1xf32> to vector<8x384xf32>
    %291 = arith.subf %178, %290 : vector<8x384xf32>
    %cst_132 = arith.constant 9.99999974E-6 : f32
    %292 = vector.broadcast %cst_132 : f32 to vector<8x1xf32>
    %293 = arith.addf %289, %292 : vector<8x1xf32>
    %294 = math.rsqrt %293 : vector<8x1xf32>
    %295 = arith.mulf %294, %179 : vector<8x1xf32>
    %296 = vector.broadcast %295 : vector<8x1xf32> to vector<8x384xf32>
    %297 = arith.mulf %291, %296 : vector<8x384xf32>
    %298 = vector.broadcast %180 : vector<8x1xf32> to vector<8x384xf32>
    %299 = arith.addf %297, %298 : vector<8x384xf32>
    %300 = arith.negf %299 : vector<8x384xf32>
    %301 = math.exp %300 : vector<8x384xf32>
    %cst_133 = arith.constant 1.000000e+00 : f32
    %302 = vector.broadcast %cst_133 : f32 to vector<8x384xf32>
    %303 = arith.addf %302, %301 : vector<8x384xf32>
    %304 = arith.divf %302, %303 : vector<8x384xf32>
    %305 = arith.mulf %299, %304 : vector<8x384xf32>
    %c0_134 = arith.constant 0 : index
    %c0_135 = arith.constant 0 : index
    %306 = vector.load %arg14[%c0_134, %c0_135] : memref<8x4xbf16, #tpu.memory_space<vmem>>, vector<8x4xbf16>
    %c0_136 = arith.constant 0 : index
    %c0_137 = arith.constant 0 : index
    %c0_138 = arith.constant 0 : index
    %307 = vector.load %arg2[%c0_136, %c0_137, %c0_138] : memref<1x4x384xf32, #tpu.memory_space<vmem>>, vector<1x4x384xf32>
    %308 = vector.shape_cast %307 : vector<1x4x384xf32> to vector<4x384xf32>
    %309 = arith.truncf %308 : vector<4x384xf32> to vector<4x384xbf16>
    %cst_139 = arith.constant dense<0.000000e+00> : vector<8x384xf32>
    %310 = tpu.matmul %306, %309, %cst_139 {dimension_numbers = #tpu.dot_dimension_numbers<[1], [0], [0], [1], [0, 0, 1, 1], [], []>} : vector<8x4xbf16>, vector<4x384xbf16>, vector<8x384xf32> -> vector<8x384xf32>
    %c0_140 = arith.constant 0 : index
    %c0_141 = arith.constant 0 : index
    %311 = vector.load %arg15[%c0_140, %c0_141] : memref<8x1xf32, #tpu.memory_space<vmem>>, vector<8x1xf32>
    %312 = vector.broadcast %311 : vector<8x1xf32> to vector<8x384xf32>
    %313 = arith.addf %310, %312 : vector<8x384xf32>
    %314 = arith.addf %305, %313 : vector<8x384xf32>
    %c0_142 = arith.constant 0 : index
    %c0_143 = arith.constant 0 : index
    %c0_144 = arith.constant 0 : index
    %315 = vector.load %arg16[%c0_142, %c0_143, %c0_144] : memref<1x8x384xf32, #tpu.memory_space<vmem>>, vector<1x8x384xf32>
    %316 = vector.shape_cast %315 : vector<1x8x384xf32> to vector<8x384xf32>
    %317 = vector.shape_cast %314 : vector<8x384xf32> to vector<1x8x384xf32>
    tpu.vector_store %arg16[%c0_142, %c0_143, %c0_144], %317 {strides = array<i32>} : memref<1x8x384xf32, #tpu.memory_space<vmem>>, vector<1x8x384xf32>,
    return
  }
  func.func @transform_0(%arg0: i32) -> (i32, i32, i32) {
    %c0_i32 = arith.constant 0 : i32
    %c0_i32_0 = arith.constant 0 : i32
    %c0_i32_1 = arith.constant 0 : i32
    return %arg0, %c0_i32, %c0_i32_0 : i32, i32, i32
  }
  func.func @transform_1(%arg0: i32) -> (i32, i32, i32) {
    %c0_i32 = arith.constant 0 : i32
    %c0_i32_0 = arith.constant 0 : i32
    %c0_i32_1 = arith.constant 0 : i32
    return %arg0, %c0_i32, %c0_i32_0 : i32, i32, i32
  }
  func.func @transform_2(%arg0: i32) -> (i32, i32) {
    %c0_i32 = arith.constant 0 : i32
    %c0_i32_0 = arith.constant 0 : i32
    %c0_i32_1 = arith.constant 0 : i32
    return %c0_i32, %c0_i32_0 : i32, i32
  }
  func.func @transform_3(%arg0: i32) -> (i32, i32, i32) {
    %c0_i32 = arith.constant 0 : i32
    %c0_i32_0 = arith.constant 0 : i32
    %c0_i32_1 = arith.constant 0 : i32
    %c0_i32_2 = arith.constant 0 : i32
    return %c0_i32, %c0_i32_0, %c0_i32_1 : i32, i32, i32
  }
  func.func @transform_4(%arg0: i32) -> (i32, i32) {
    %c0_i32 = arith.constant 0 : i32
    %c0_i32_0 = arith.constant 0 : i32
    %c0_i32_1 = arith.constant 0 : i32
    return %c0_i32, %c0_i32_0 : i32, i32
  }
  func.func @transform_5(%arg0: i32) -> (i32, i32) {
    %c0_i32 = arith.constant 0 : i32
    %c0_i32_0 = arith.constant 0 : i32
    %c0_i32_1 = arith.constant 0 : i32
    return %c0_i32, %c0_i32_0 : i32, i32
  }
  func.func @transform_6(%arg0: i32) -> (i32, i32) {
    %c0_i32 = arith.constant 0 : i32
    %c0_i32_0 = arith.constant 0 : i32
    %c0_i32_1 = arith.constant 0 : i32
    return %c0_i32, %c0_i32_0 : i32, i32
  }
  func.func @transform_7(%arg0: i32) -> (i32, i32) {
    %c0_i32 = arith.constant 0 : i32
    %c0_i32_0 = arith.constant 0 : i32
    %c0_i32_1 = arith.constant 0 : i32
    return %c0_i32, %c0_i32_0 : i32, i32
  }
  func.func @transform_8(%arg0: i32) -> (i32, i32, i32) {
    %c0_i32 = arith.constant 0 : i32
    %c0_i32_0 = arith.constant 0 : i32
    %c0_i32_1 = arith.constant 0 : i32
    return %arg0, %c0_i32, %c0_i32_0 : i32, i32, i32
  }
  func.func @transform_9(%arg0: i32) -> (i32, i32) {
    %c0_i32 = arith.constant 0 : i32
    %c0_i32_0 = arith.constant 0 : i32
    %c0_i32_1 = arith.constant 0 : i32
    return %c0_i32, %c0_i32_0 : i32, i32
  }
  func.func @transform_10(%arg0: i32) -> (i32, i32) {
    %c0_i32 = arith.constant 0 : i32
    %c0_i32_0 = arith.constant 0 : i32
    %c0_i32_1 = arith.constant 0 : i32
    return %c0_i32, %c0_i32_0 : i32, i32
  }
  func.func @transform_11(%arg0: i32) -> (i32, i32) {
    %c0_i32 = arith.constant 0 : i32
    %c0_i32_0 = arith.constant 0 : i32
    %c0_i32_1 = arith.constant 0 : i32
    return %c0_i32, %c0_i32_0 : i32, i32
  }
  func.func @transform_12(%arg0: i32) -> (i32, i32) {
    %c0_i32 = arith.constant 0 : i32
    %c0_i32_0 = arith.constant 0 : i32
    %c0_i32_1 = arith.constant 0 : i32
    return %c0_i32, %c0_i32_0 : i32, i32
  }
  func.func @transform_13(%arg0: i32) -> (i32, i32) {
    %c0_i32 = arith.constant 0 : i32
    %c0_i32_0 = arith.constant 0 : i32
    %c0_i32_1 = arith.constant 0 : i32
    return %c0_i32, %c0_i32_0 : i32, i32
  }
  func.func @transform_14(%arg0: i32) -> (i32, i32) {
    %c0_i32 = arith.constant 0 : i32
    %c0_i32_0 = arith.constant 0 : i32
    %c0_i32_1 = arith.constant 0 : i32
    return %c0_i32, %c0_i32_0 : i32, i32
  }
  func.func @transform_15(%arg0: i32) -> (i32, i32, i32) {
    %c0_i32 = arith.constant 0 : i32
    %c0_i32_0 = arith.constant 0 : i32
    %c0_i32_1 = arith.constant 0 : i32
    return %arg0, %c0_i32, %c0_i32_0 : i32, i32, i32
  }
}

</mosaic_0001>

<llo_original>
// kernel: resnet_block_apply.1
$region0: #{resnet_block_apply.1}
  #allocation0 [shape = 'u32[]', space=smem, size = 0x4, offset = 0x4, fixed_abs, tag = 'smem constant byte address 0x4 - core index']
  #allocation1 [shape = 'u32[72,128]{1,0:T(1,128)}', space=vmem, size = 0x9000, scoped, tag = 'internal scratch']
  #allocation2 [shape = 'bf16[8,512]{1,0:T(8,128)(2,1)}', space=vmem, size = 0x2000, scoped, tag = 'scratch operand']
  %s0 = inlined_call_operand.vmem [shape: bf16[2,4,512], index: 0, kind: input, shape index: {}]
  %s1 = inlined_call_operand.vmem [shape: f32[2,4,384], index: 1, kind: input, shape index: {}]
  %s2 = inlined_call_operand.vmem [shape: f32[1,384], index: 2, kind: input, shape index: {}]
  %s3 = inlined_call_operand.vmem [shape: f32[4,8,1], index: 3, kind: input, shape index: {}]
  %s4 = inlined_call_operand.vmem [shape: bf16[8,36], index: 4, kind: input, shape index: {}]
  %s5 = inlined_call_operand.vmem [shape: f32[8,1], index: 5, kind: input, shape index: {}]
  %s6 = inlined_call_operand.vmem [shape: f32[8,1], index: 6, kind: input, shape index: {}]
  %s7 = inlined_call_operand.vmem [shape: f32[8,1], index: 7, kind: input, shape index: {}]
  %s8 = inlined_call_operand.vmem [shape: f32[2,8,1], index: 8, kind: input, shape index: {}]
  %s9 = inlined_call_operand.vmem [shape: bf16[8,72], index: 9, kind: input, shape index: {}]
  %s10 = inlined_call_operand.vmem [shape: f32[8,1], index: 10, kind: input, shape index: {}]
  %s11 = inlined_call_operand.vmem [shape: f32[8,1], index: 11, kind: input, shape index: {}]
  %s12 = inlined_call_operand.vmem [shape: f32[8,1], index: 12, kind: input, shape index: {}]
  %s13 = inlined_call_operand.vmem [shape: bf16[8,4], index: 13, kind: input, shape index: {}]
  %s14 = inlined_call_operand.vmem [shape: f32[8,1], index: 14, kind: input, shape index: {}]
  %s15 = inlined_call_operand.vmem [shape: f32[2,8,384], index: 15, kind: output, shape index: {}]
  %s16 = sld [smem:[#allocation0]]
  $region93: #{resnet_block_apply.1} parent=0
    _
  %s18 = ssub.s32 1, %s16
  %s19 = scalar_select 0, %s18, %s16
  loop: start=0, step=1, limit=4
  $region2: #{resnet_block_apply.1} parent=0 // loop_pre_header
    _
  $region3: #{resnet_block_apply.1} parent=0 // loop_header
    %s21 = sphi 0, %s25
    %p22 = scmp.ge.s32.totalorder %s21, 4
    %s31 = sphi 0, %s33
    %s34 = sphi 0, %s31
    %s35 = sphi 0, %s34
    %s51 = sphi 0, %s35
    %s57 = sphi 0, %s59
    %s60 = sphi 0, %s57
    %s61 = sphi 0, %s60
    %s77 = sphi 0, %s61
    %s81 = sphi 0, %s81
    %s83 = sphi 0, %s81
    %s84 = sphi 0, %s83
    %s98 = sphi 0, %s84
    %s102 = sphi 0, %s102
    %s104 = sphi 0, %s102
    %s105 = sphi 0, %s104
    %s119 = sphi 0, %s105
    %s123 = sphi 0, %s123
    %s125 = sphi 0, %s123
    %s126 = sphi 0, %s125
    %s140 = sphi 0, %s126
    %s144 = sphi 0, %s144
    %s146 = sphi 0, %s144
    %s147 = sphi 0, %s146
    %s161 = sphi 0, %s147
    %s165 = sphi 0, %s165
    %s167 = sphi 0, %s165
    %s168 = sphi 0, %s167
    %s182 = sphi 0, %s168
    %s186 = sphi 0, %s186
    %s188 = sphi 0, %s186
    %s189 = sphi 0, %s188
    %s203 = sphi 0, %s189
    %s209 = sphi 0, %s211
    %s212 = sphi 0, %s209
    %s213 = sphi 0, %s212
    %s229 = sphi 0, %s213
    %s233 = sphi 0, %s233
    %s235 = sphi 0, %s233
    %s236 = sphi 0, %s235
    %s250 = sphi 0, %s236
    %s254 = sphi 0, %s254
    %s256 = sphi 0, %s254
    %s257 = sphi 0, %s256
    %s271 = sphi 0, %s257
    %s275 = sphi 0, %s275
    %s277 = sphi 0, %s275
    %s278 = sphi 0, %s277
    %s292 = sphi 0, %s278
    %s296 = sphi 0, %s296
    %s298 = sphi 0, %s296
    %s299 = sphi 0, %s298
    %s313 = sphi 0, %s299
    %s317 = sphi 0, %s317
    %s319 = sphi 0, %s317
    %s320 = sphi 0, %s319
    %s334 = sphi 0, %s320
    %s338 = sphi 0, %s338
    %s340 = sphi 0, %s338
    %s341 = sphi 0, %s340
    %s355 = sphi 0, %s341
    %s361 = sphi 0, %s363
    %s364 = sphi 0, %s361
    %s365 = sphi 0, %s364
    %s381 = sphi 0, %s365
  $region4: #{resnet_block_apply.1} parent=0 // loop_header_branch
    %24 = sbr.rel (%p22) target = $region8
  $region5: #{resnet_block_apply.1} parent=0 // loop_body
    %s26 = ssub.s32 %s21, 1
    %s27 = ssub.s32 %s21, 2
    %s28 = sadd.s32 %s21, 1
    %s29 = ssub.s32 %s21, %s28
    %p30 = scmp.eq.s32.totalorder %s29, 0
    %s32 = sadd.s32 %s31, 1
    %s33 = scalar_select %p30, %s31, %s32
    %p36 = pneg %p30
    %p37 = scmp.eq.s32.totalorder %s21, 1
    %p38 = por %p36, %p37
    %p39 = scmp.ne.s32.totalorder %s31, %s34
    %p40 = scmp.eq.s32.totalorder %s21, 0
    %p41 = por %p39, %p40
    %p42 = scmp.ne.s32.totalorder %s31, %s34
    %p43 = scmp.eq.s32.totalorder %s26, 1
    %p44 = por %p42, %p43
    %p45 = scmp.ne.s32.totalorder %s34, %s35
    %p46 = scmp.eq.s32.totalorder %s26, 0
    %p47 = por %p45, %p46
    %p48 = scmp.ne.s32.totalorder %s34, %s35
    %p49 = scmp.eq.s32.totalorder %s27, 1
    %p50 = por %p48, %p49
    %p52 = scmp.ne.s32.totalorder %s35, %s51
    %p53 = scmp.eq.s32.totalorder %s27, 0
    %p54 = por %p52, %p53
    %s55 = ssub.s32 %s21, %s28
    %p56 = scmp.eq.s32.totalorder %s55, 0
    %s58 = sadd.s32 %s57, 1
    %s59 = scalar_select %p56, %s57, %s58
    %p62 = pneg %p56
    %p63 = scmp.eq.s32.totalorder %s21, 1
    %p64 = por %p62, %p63
    %p65 = scmp.ne.s32.totalorder %s57, %s60
    %p66 = scmp.eq.s32.totalorder %s21, 0
    %p67 = por %p65, %p66
    %p68 = scmp.ne.s32.totalorder %s57, %s60
    %p69 = scmp.eq.s32.totalorder %s26, 1
    %p70 = por %p68, %p69
    %p71 = scmp.ne.s32.totalorder %s60, %s61
    %p72 = scmp.eq.s32.totalorder %s26, 0
    %p73 = por %p71, %p72
    %p74 = scmp.ne.s32.totalorder %s60, %s61
    %p75 = scmp.eq.s32.totalorder %s27, 1
    %p76 = por %p74, %p75
    %p78 = scmp.ne.s32.totalorder %s61, %s77
    %p79 = scmp.eq.s32.totalorder %s27, 0
    %p80 = por %p78, %p79
    %s82 = sadd.s32 %s81, 1
    %p85 = scmp.eq.s32.totalorder %s21, 1
    %p86 = scmp.ne.s32.totalorder %s81, %s83
    %p87 = scmp.eq.s32.totalorder %s21, 0
    %p88 = por %p86, %p87
    %p89 = scmp.ne.s32.totalorder %s81, %s83
    %p90 = scmp.eq.s32.totalorder %s26, 1
    %p91 = por %p89, %p90
    %p92 = scmp.ne.s32.totalorder %s83, %s84
    %p93 = scmp.eq.s32.totalorder %s26, 0
    %p94 = por %p92, %p93
    %p95 = scmp.ne.s32.totalorder %s83, %s84
    %p96 = scmp.eq.s32.totalorder %s27, 1
    %p97 = por %p95, %p96
    %p99 = scmp.ne.s32.totalorder %s84, %s98
    %p100 = scmp.eq.s32.totalorder %s27, 0
    %p101 = por %p99, %p100
    %s103 = sadd.s32 %s102, 1
    %p106 = scmp.eq.s32.totalorder %s21, 1
    %p107 = scmp.ne.s32.totalorder %s102, %s104
    %p108 = scmp.eq.s32.totalorder %s21, 0
    %p109 = por %p107, %p108
    %p110 = scmp.ne.s32.totalorder %s102, %s104
    %p111 = scmp.eq.s32.totalorder %s26, 1
    %p112 = por %p110, %p111
    %p113 = scmp.ne.s32.totalorder %s104, %s105
    %p114 = scmp.eq.s32.totalorder %s26, 0
    %p115 = por %p113, %p114
    %p116 = scmp.ne.s32.totalorder %s104, %s105
    %p117 = scmp.eq.s32.totalorder %s27, 1
    %p118 = por %p116, %p117
    %p120 = scmp.ne.s32.totalorder %s105, %s119
    %p121 = scmp.eq.s32.totalorder %s27, 0
    %p122 = por %p120, %p121
    %s124 = sadd.s32 %s123, 1
    %p127 = scmp.eq.s32.totalorder %s21, 1
    %p128 = scmp.ne.s32.totalorder %s123, %s125
    %p129 = scmp.eq.s32.totalorder %s21, 0
    %p130 = por %p128, %p129
    %p131 = scmp.ne.s32.totalorder %s123, %s125
    %p132 = scmp.eq.s32.totalorder %s26, 1
    %p133 = por %p131, %p132
    %p134 = scmp.ne.s32.totalorder %s125, %s126
    %p135 = scmp.eq.s32.totalorder %s26, 0
    %p136 = por %p134, %p135
    %p137 = scmp.ne.s32.totalorder %s125, %s126
    %p138 = scmp.eq.s32.totalorder %s27, 1
    %p139 = por %p137, %p138
    %p141 = scmp.ne.s32.totalorder %s126, %s140
    %p142 = scmp.eq.s32.totalorder %s27, 0
    %p143 = por %p141, %p142
    %s145 = sadd.s32 %s144, 1
    %p148 = scmp.eq.s32.totalorder %s21, 1
    %p149 = scmp.ne.s32.totalorder %s144, %s146
    %p150 = scmp.eq.s32.totalorder %s21, 0
    %p151 = por %p149, %p150
    %p152 = scmp.ne.s32.totalorder %s144, %s146
    %p153 = scmp.eq.s32.totalorder %s26, 1
    %p154 = por %p152, %p153
    %p155 = scmp.ne.s32.totalorder %s146, %s147
    %p156 = scmp.eq.s32.totalorder %s26, 0
    %p157 = por %p155, %p156
    %p158 = scmp.ne.s32.totalorder %s146, %s147
    %p159 = scmp.eq.s32.totalorder %s27, 1
    %p160 = por %p158, %p159
    %p162 = scmp.ne.s32.totalorder %s147, %s161
    %p163 = scmp.eq.s32.totalorder %s27, 0
    %p164 = por %p162, %p163
    %s166 = sadd.s32 %s165, 1
    %p169 = scmp.eq.s32.totalorder %s21, 1
    %p170 = scmp.ne.s32.totalorder %s165, %s167
    %p171 = scmp.eq.s32.totalorder %s21, 0
    %p172 = por %p170, %p171
    %p173 = scmp.ne.s32.totalorder %s165, %s167
    %p174 = scmp.eq.s32.totalorder %s26, 1
    %p175 = por %p173, %p174
    %p176 = scmp.ne.s32.totalorder %s167, %s168
    %p177 = scmp.eq.s32.totalorder %s26, 0
    %p178 = por %p176, %p177
    %p179 = scmp.ne.s32.totalorder %s167, %s168
    %p180 = scmp.eq.s32.totalorder %s27, 1
    %p181 = por %p179, %p180
    %p183 = scmp.ne.s32.totalorder %s168, %s182
    %p184 = scmp.eq.s32.totalorder %s27, 0
    %p185 = por %p183, %p184
    %s187 = sadd.s32 %s186, 1
    %p190 = scmp.eq.s32.totalorder %s21, 1
    %p191 = scmp.ne.s32.totalorder %s186, %s188
    %p192 = scmp.eq.s32.totalorder %s21, 0
    %p193 = por %p191, %p192
    %p194 = scmp.ne.s32.totalorder %s186, %s188
    %p195 = scmp.eq.s32.totalorder %s26, 1
    %p196 = por %p194, %p195
    %p197 = scmp.ne.s32.totalorder %s188, %s189
    %p198 = scmp.eq.s32.totalorder %s26, 0
    %p199 = por %p197, %p198
    %p200 = scmp.ne.s32.totalorder %s188, %s189
    %p201 = scmp.eq.s32.totalorder %s27, 1
    %p202 = por %p200, %p201
    %p204 = scmp.ne.s32.totalorder %s189, %s203
    %p205 = scmp.eq.s32.totalorder %s27, 0
    %p206 = por %p204, %p205
    %s207 = ssub.s32 %s21, %s28
    %p208 = scmp.eq.s32.totalorder %s207, 0
    %s210 = sadd.s32 %s209, 1
    %s211 = scalar_select %p208, %s209, %s210
    %p214 = pneg %p208
    %p215 = scmp.eq.s32.totalorder %s21, 1
    %p216 = por %p214, %p215
    %p217 = scmp.ne.s32.totalorder %s209, %s212
    %p218 = scmp.eq.s32.totalorder %s21, 0
    %p219 = por %p217, %p218
    %p220 = scmp.ne.s32.totalorder %s209, %s212
    %p221 = scmp.eq.s32.totalorder %s26, 1
    %p222 = por %p220, %p221
    %p223 = scmp.ne.s32.totalorder %s212, %s213
    %p224 = scmp.eq.s32.totalorder %s26, 0
    %p225 = por %p223, %p224
    %p226 = scmp.ne.s32.totalorder %s212, %s213
    %p227 = scmp.eq.s32.totalorder %s27, 1
    %p228 = por %p226, %p227
    %p230 = scmp.ne.s32.totalorder %s213, %s229
    %p231 = scmp.eq.s32.totalorder %s27, 0
    %p232 = por %p230, %p231
    %s234 = sadd.s32 %s233, 1
    %p237 = scmp.eq.s32.totalorder %s21, 1
    %p238 = scmp.ne.s32.totalorder %s233, %s235
    %p239 = scmp.eq.s32.totalorder %s21, 0
    %p240 = por %p238, %p239
    %p241 = scmp.ne.s32.totalorder %s233, %s235
    %p242 = scmp.eq.s32.totalorder %s26, 1
    %p243 = por %p241, %p242
    %p244 = scmp.ne.s32.totalorder %s235, %s236
    %p245 = scmp.eq.s32.totalorder %s26, 0
    %p246 = por %p244, %p245
    %p247 = scmp.ne.s32.totalorder %s235, %s236
    %p248 = scmp.eq.s32.totalorder %s27, 1
    %p249 = por %p247, %p248
    %p251 = scmp.ne.s32.totalorder %s236, %s250
    %p252 = scmp.eq.s32.totalorder %s27, 0
    %p253 = por %p251, %p252
    %s255 = sadd.s32 %s254, 1
    %p258 = scmp.eq.s32.totalorder %s21, 1
    %p259 = scmp.ne.s32.totalorder %s254, %s256
    %p260 = scmp.eq.s32.totalorder %s21, 0
    %p261 = por %p259, %p260
    %p262 = scmp.ne.s32.totalorder %s254, %s256
    %p263 = scmp.eq.s32.totalorder %s26, 1
    %p264 = por %p262, %p263
    %p265 = scmp.ne.s32.totalorder %s256, %s257
    %p266 = scmp.eq.s32.totalorder %s26, 0
    %p267 = por %p265, %p266
    %p268 = scmp.ne.s32.totalorder %s256, %s257
    %p269 = scmp.eq.s32.totalorder %s27, 1
    %p270 = por %p268, %p269
    %p272 = scmp.ne.s32.totalorder %s257, %s271
    %p273 = scmp.eq.s32.totalorder %s27, 0
    %p274 = por %p272, %p273
    %s276 = sadd.s32 %s275, 1
    %p279 = scmp.eq.s32.totalorder %s21, 1
    %p280 = scmp.ne.s32.totalorder %s275, %s277
    %p281 = scmp.eq.s32.totalorder %s21, 0
    %p282 = por %p280, %p281
    %p283 = scmp.ne.s32.totalorder %s275, %s277
    %p284 = scmp.eq.s32.totalorder %s26, 1
    %p285 = por %p283, %p284
    %p286 = scmp.ne.s32.totalorder %s277, %s278
    %p287 = scmp.eq.s32.totalorder %s26, 0
    %p288 = por %p286, %p287
    %p289 = scmp.ne.s32.totalorder %s277, %s278
    %p290 = scmp.eq.s32.totalorder %s27, 1
    %p291 = por %p289, %p290
    %p293 = scmp.ne.s32.totalorder %s278, %s292
    %p294 = scmp.eq.s32.totalorder %s27, 0
    %p295 = por %p293, %p294
    %s297 = sadd.s32 %s296, 1
    %p300 = scmp.eq.s32.totalorder %s21, 1
    %p301 = scmp.ne.s32.totalorder %s296, %s298
    %p302 = scmp.eq.s32.totalorder %s21, 0
    %p303 = por %p301, %p302
    %p304 = scmp.ne.s32.totalorder %s296, %s298
    %p305 = scmp.eq.s32.totalorder %s26, 1
    %p306 = por %p304, %p305
    %p307 = scmp.ne.s32.totalorder %s298, %s299
    %p308 = scmp.eq.s32.totalorder %s26, 0
    %p309 = por %p307, %p308
    %p310 = scmp.ne.s32.totalorder %s298, %s299
    %p311 = scmp.eq.s32.totalorder %s27, 1
    %p312 = por %p310, %p311
    %p314 = scmp.ne.s32.totalorder %s299, %s313
    %p315 = scmp.eq.s32.totalorder %s27, 0
    %p316 = por %p314, %p315
    %s318 = sadd.s32 %s317, 1
    %p321 = scmp.eq.s32.totalorder %s21, 1
    %p322 = scmp.ne.s32.totalorder %s317, %s319
    %p323 = scmp.eq.s32.totalorder %s21, 0
    %p324 = por %p322, %p323
    %p325 = scmp.ne.s32.totalorder %s317, %s319
    %p326 = scmp.eq.s32.totalorder %s26, 1
    %p327 = por %p325, %p326
    %p328 = scmp.ne.s32.totalorder %s319, %s320
    %p329 = scmp.eq.s32.totalorder %s26, 0
    %p330 = por %p328, %p329
    %p331 = scmp.ne.s32.totalorder %s319, %s320
    %p332 = scmp.eq.s32.totalorder %s27, 1
    %p333 = por %p331, %p332
    %p335 = scmp.ne.s32.totalorder %s320, %s334
    %p336 = scmp.eq.s32.totalorder %s27, 0
    %p337 = por %p335, %p336
    %s339 = sadd.s32 %s338, 1
    %p342 = scmp.eq.s32.totalorder %s21, 1
    %p343 = scmp.ne.s32.totalorder %s338, %s340
    %p344 = scmp.eq.s32.totalorder %s21, 0
    %p345 = por %p343, %p344
    %p346 = scmp.ne.s32.totalorder %s338, %s340
    %p347 = scmp.eq.s32.totalorder %s26, 1
    %p348 = por %p346, %p347
    %p349 = scmp.ne.s32.totalorder %s340, %s341
    %p350 = scmp.eq.s32.totalorder %s26, 0
    %p351 = por %p349, %p350
    %p352 = scmp.ne.s32.totalorder %s340, %s341
    %p353 = scmp.eq.s32.totalorder %s27, 1
    %p354 = por %p352, %p353
    %p356 = scmp.ne.s32.totalorder %s341, %s355
    %p357 = scmp.eq.s32.totalorder %s27, 0
    %p358 = por %p356, %p357
    %s359 = ssub.s32 %s21, %s28
    %p360 = scmp.eq.s32.totalorder %s359, 0
    %s362 = sadd.s32 %s361, 1
    %s363 = scalar_select %p360, %s361, %s362
    %p366 = pneg %p360
    %p367 = scmp.eq.s32.totalorder %s21, 1
    %p368 = por %p366, %p367
    %p369 = scmp.ne.s32.totalorder %s361, %s364
    %p370 = scmp.eq.s32.totalorder %s21, 0
    %p371 = por %p369, %p370
    %p372 = scmp.ne.s32.totalorder %s361, %s364
    %p373 = scmp.eq.s32.totalorder %s26, 1
    %p374 = por %p372, %p373
    %p375 = scmp.ne.s32.totalorder %s364, %s365
    %p376 = scmp.eq.s32.totalorder %s26, 0
    %p377 = por %p375, %p376
    %p378 = scmp.ne.s32.totalorder %s364, %s365
    %p379 = scmp.eq.s32.totalorder %s27, 1
    %p380 = por %p378, %p379
    %p382 = scmp.ne.s32.totalorder %s365, %s381
    %p383 = scmp.eq.s32.totalorder %s27, 0
    %p384 = por %p382, %p383
    %p385 = scmp.le.s32.totalorder 1, %s21
    %p386 = scmp.lt.s32.totalorder %s21, 3
    %p387 = pnand %p385, %p386
    %p388 = pneg %p387
    // Predicated region
    $region9: #{resnet_block_apply.1} parent=5 // pred_check
      _
    $region10: #{resnet_block_apply.1} parent=5 // pred_check_branch
      %390 = sbr.rel (%p387) target = $region12
    $region11: #{resnet_block_apply.1} parent=5 // pred_region
      %s391 = ssub.s32 %s21, 1
      // Predicated region
      $region13: #{resnet_block_apply.1} parent=11 // pred_check
        %p392 = pneg %p94
      $region14: #{resnet_block_apply.1} parent=11 // pred_check_branch
        %394 = sbr.rel (%p392) target = $region16
      $region15: #{resnet_block_apply.1} parent=11 // pred_region
        _
      $region16: #{resnet_block_apply.1} parent=11 // pred_fallthru
        _
      // Predicated region
      $region17: #{resnet_block_apply.1} parent=11 // pred_check
        %p395 = pneg %p115
      $region18: #{resnet_block_apply.1} parent=11 // pred_check_branch
        %397 = sbr.rel (%p395) target = $region20
      $region19: #{resnet_block_apply.1} parent=11 // pred_region
        _
      $region20: #{resnet_block_apply.1} parent=11 // pred_fallthru
        _
      // Predicated region
      $region21: #{resnet_block_apply.1} parent=11 // pred_check
        %p398 = pneg %p136
      $region22: #{resnet_block_apply.1} parent=11 // pred_check_branch
        %400 = sbr.rel (%p398) target = $region24
      $region23: #{resnet_block_apply.1} parent=11 // pred_region
        _
      $region24: #{resnet_block_apply.1} parent=11 // pred_fallthru
        _
      // Predicated region
      $region25: #{resnet_block_apply.1} parent=11 // pred_check
        %p401 = pneg %p157
      $region26: #{resnet_block_apply.1} parent=11 // pred_check_branch
        %403 = sbr.rel (%p401) target = $region28
      $region27: #{resnet_block_apply.1} parent=11 // pred_region
        _
      $region28: #{resnet_block_apply.1} parent=11 // pred_fallthru
        _
      // Predicated region
      $region29: #{resnet_block_apply.1} parent=11 // pred_check
        %p404 = pneg %p178
      $region30: #{resnet_block_apply.1} parent=11 // pred_check_branch
        %406 = sbr.rel (%p404) target = $region32
      $region31: #{resnet_block_apply.1} parent=11 // pred_region
        _
      $region32: #{resnet_block_apply.1} parent=11 // pred_fallthru
        _
      // Predicated region
      $region33: #{resnet_block_apply.1} parent=11 // pred_check
        %p407 = pneg %p199
      $region34: #{resnet_block_apply.1} parent=11 // pred_check_branch
        %409 = sbr.rel (%p407) target = $region36
      $region35: #{resnet_block_apply.1} parent=11 // pred_region
        _
      $region36: #{resnet_block_apply.1} parent=11 // pred_fallthru
        _
      // Predicated region
      $region37: #{resnet_block_apply.1} parent=11 // pred_check
        %p410 = pneg %p246
      $region38: #{resnet_block_apply.1} parent=11 // pred_check_branch
        %412 = sbr.rel (%p410) target = $region40
      $region39: #{resnet_block_apply.1} parent=11 // pred_region
        _
      $region40: #{resnet_block_apply.1} parent=11 // pred_fallthru
        _
      // Predicated region
      $region41: #{resnet_block_apply.1} parent=11 // pred_check
        %p413 = pneg %p267
      $region42: #{resnet_block_apply.1} parent=11 // pred_check_branch
        %415 = sbr.rel (%p413) target = $region44
      $region43: #{resnet_block_apply.1} parent=11 // pred_region
        _
      $region44: #{resnet_block_apply.1} parent=11 // pred_fallthru
        _
      // Predicated region
      $region45: #{resnet_block_apply.1} parent=11 // pred_check
        %p416 = pneg %p288
      $region46: #{resnet_block_apply.1} parent=11 // pred_check_branch
        %418 = sbr.rel (%p416) target = $region48
      $region47: #{resnet_block_apply.1} parent=11 // pred_region
        _
      $region48: #{resnet_block_apply.1} parent=11 // pred_fallthru
        _
      // Predicated region
      $region49: #{resnet_block_apply.1} parent=11 // pred_check
        %p419 = pneg %p309
      $region50: #{resnet_block_apply.1} parent=11 // pred_check_branch
        %421 = sbr.rel (%p419) target = $region52
      $region51: #{resnet_block_apply.1} parent=11 // pred_region
        _
      $region52: #{resnet_block_apply.1} parent=11 // pred_fallthru
        _
      // Predicated region
      $region53: #{resnet_block_apply.1} parent=11 // pred_check
        %p422 = pneg %p330
      $region54: #{resnet_block_apply.1} parent=11 // pred_check_branch
        %424 = sbr.rel (%p422) target = $region56
      $region55: #{resnet_block_apply.1} parent=11 // pred_region
        _
      $region56: #{resnet_block_apply.1} parent=11 // pred_fallthru
        _
      // Predicated region
      $region57: #{resnet_block_apply.1} parent=11 // pred_check
        %p425 = pneg %p351
      $region58: #{resnet_block_apply.1} parent=11 // pred_check_branch
        %427 = sbr.rel (%p425) target = $region60
      $region59: #{resnet_block_apply.1} parent=11 // pred_region
        _
      $region60: #{resnet_block_apply.1} parent=11 // pred_fallthru
        _
    $region12: #{resnet_block_apply.1} parent=5 // pred_fallthru
      _
    %p428 = scmp.lt.s32.totalorder %s21, 2
    // Predicated region
    $region61: #{resnet_block_apply.1} parent=5 // pred_check
      %p429 = pneg %p428
    $region62: #{resnet_block_apply.1} parent=5 // pred_check_branch
      %431 = sbr.rel (%p429) target = $region64
    $region63: #{resnet_block_apply.1} parent=5 // pred_region
      // Predicated region
      $region65: #{resnet_block_apply.1} parent=63 // pred_check
        %p432 = pneg %p41
      $region66: #{resnet_block_apply.1} parent=63 // pred_check_branch
        %434 = sbr.rel (%p432) target = $region68
      $region67: #{resnet_block_apply.1} parent=63 // pred_region
        %p435 = scmp.lt.s32.totalorder %s21, 1
        %s436 = scalar_select %p435, %s21, 1
        %s437 = smul.addr %s436, 4
        %s438 = smul.addr %s437, 2
        %s439 = scalar_lea.vmem %s0, %s438
      $region68: #{resnet_block_apply.1} parent=63 // pred_fallthru
        _
      // Predicated region
      $region69: #{resnet_block_apply.1} parent=63 // pred_check
        %p440 = pneg %p67
      $region70: #{resnet_block_apply.1} parent=63 // pred_check_branch
        %442 = sbr.rel (%p440) target = $region72
      $region71: #{resnet_block_apply.1} parent=63 // pred_region
        %p443 = scmp.lt.s32.totalorder %s21, 1
        %s444 = scalar_select %p443, %s21, 1
        %s445 = smul.addr %s444, 3
        %s446 = smul.addr %s445, 4
        %s447 = scalar_lea.vmem %s1, %s446
      $region72: #{resnet_block_apply.1} parent=63 // pred_fallthru
        _
      // Predicated region
      $region73: #{resnet_block_apply.1} parent=63 // pred_check
        %p448 = pneg %p219
      $region74: #{resnet_block_apply.1} parent=63 // pred_check_branch
        %450 = sbr.rel (%p448) target = $region76
      $region75: #{resnet_block_apply.1} parent=63 // pred_region
        %p451 = scmp.lt.s32.totalorder %s21, 1
        %s452 = scalar_select %p451, %s21, 1
        %s453 = smul.addr %s452, 8
        %s454 = scalar_lea.vmem %s8, %s453
      $region76: #{resnet_block_apply.1} parent=63 // pred_fallthru
        _
    $region64: #{resnet_block_apply.1} parent=5 // pred_fallthru
      _
    %p455 = scmp.le.s32.totalorder 1, %s21
    %p456 = scmp.lt.s32.totalorder %s21, 3
    %p457 = pnand %p455, %p456
    %p458 = pneg %p457
    // Predicated region
    $region77: #{resnet_block_apply.1} parent=5 // pred_check
      _
    $region78: #{resnet_block_apply.1} parent=5 // pred_check_branch
      %460 = sbr.rel (%p457) target = $region80
    $region79: #{resnet_block_apply.1} parent=5 // pred_region
      %s461 = ssub.s32 %s21, 1
      %p462 = scmp.lt.s32.totalorder %s26, 1
      %s463 = scalar_select %p462, %s26, 1
      %s464 = smul.addr %s463, 4
      %s465 = smul.addr %s464, 2
      %s466 = scalar_lea.vmem %s0, %s465
      %p467 = pneg %p47
      %p468 = pneg %p44
      %p469 = scmp.lt.s32.totalorder %s26, 1
      %s470 = scalar_select %p469, %s26, 1
      %s471 = smul.addr %s470, 3
      %s472 = smul.addr %s471, 4
      %s473 = scalar_lea.vmem %s1, %s472
      %p474 = pneg %p73
      %p475 = pneg %p70
      %p476 = pneg %p94
      %p477 = pneg %p91
      %p478 = pneg %p115
      %p479 = pneg %p112
      %p480 = pneg %p136
      %p481 = pneg %p133
      %p482 = pneg %p157
      %p483 = pneg %p154
      %p484 = pneg %p178
      %p485 = pneg %p175
      %p486 = pneg %p199
      %p487 = pneg %p196
      %p488 = scmp.lt.s32.totalorder %s26, 1
      %s489 = scalar_select %p488, %s26, 1
      %s490 = smul.addr %s489, 8
      %s491 = scalar_lea.vmem %s8, %s490
      %p492 = pneg %p225
      %p493 = pneg %p222
      %p494 = pneg %p246
      %p495 = pneg %p243
      %p496 = pneg %p267
      %p497 = pneg %p264
      %p498 = pneg %p288
      %p499 = pneg %p285
      %p500 = pneg %p309
      %p501 = pneg %p306
      %p502 = pneg %p330
      %p503 = pneg %p327
      %p504 = pneg %p351
      %p505 = pneg %p348
      %p506 = pneg %p377
      %p507 = pneg %p374
      %p508 = scmp.lt.s32.totalorder %s26, 1
      %s509 = scalar_select %p508, %s26, 1
      %s510 = smul.addr %s509, 3
      %s511 = smul.addr %s510, 8
      %s512 = scalar_lea.vmem %s15, %s511
      %p513 = scmp.lt.s32.totalorder %s26, 1
      %s514 = scalar_select %p513, %s26, 1
      %s515 = smul.addr %s514, 4
      %s516 = smul.addr %s515, 2
      %s517 = scalar_lea.vmem %s0, %s516
      %p518 = scmp.lt.s32.totalorder %s26, 1
      %s519 = scalar_select %p518, %s26, 1
      %s520 = smul.addr %s519, 3
      %s521 = smul.addr %s520, 4
      %s522 = scalar_lea.vmem %s1, %s521
      %p523 = scmp.lt.s32.totalorder %s26, 1
      %s524 = scalar_select %p523, %s26, 1
      %s525 = smul.addr %s524, 8
      %s526 = scalar_lea.vmem %s8, %s525
      %p527 = scmp.lt.s32.totalorder %s26, 1
      %s528 = scalar_select %p527, %s26, 1
      %s529 = smul.addr %s528, 3
      %s530 = smul.addr %s529, 8
      %s531 = scalar_lea.vmem %s15, %s530
      %v533 = vld [vmem:[%s2] sm:$0x7]
      %v534 = vld [vmem:[%s517] sm:$0x3f]
      %v535 = vld [vmem:[%s517] sm:$0xff]
      %537 = vst [vmem:[#allocation1] ss:$4 sm:$0xff] %v534
      %v538 = vld.sshfl [vmem:[#allocation1] sm:$0xff pattern:$0x73625140]
      %v539 = vld.sshfl [vmem:[#allocation1 + $0x8] sm:$0xff pattern:$0x73625140]
      %v540 = vld.sshfl [vmem:[#allocation1 + $0x10] sm:$0xff pattern:$0x73625140]
      %s542 = scalar_lea.vmem [#allocation1], 1
      %543 = vst [vmem:[%s542] ss:$4 sm:$0xff] %v535
      %v544 = vld.sshfl [vmem:[#allocation1] sm:$0xff pattern:$0x73625140]
      %v546 = vld.sshfl [vmem:[#allocation1 + $0x8] sm:$0xff pattern:$0x73625140]
      %v548 = vld.sshfl [vmem:[#allocation1 + $0x10] sm:$0xff pattern:$0x73625140]
      %v550 = vld.sshfl [vmem:[#allocation1 + $0x18] sm:$0xff pattern:$0x73625140]
      %552 = vrot.lane.b32.xlu0 %v544, 127
      %v553 = vpop.permute.xlu0 %552
      %554 = vrot.lane.b32.xlu0 %v546, 127
      %v555 = vpop.permute.xlu0 %554
      %556 = vrot.lane.b32.xlu0 %v548, 127
      %v557 = vpop.permute.xlu0 %556
      %558 = vrot.lane.b32.xlu0 %v550, 127
      %v559 = vpop.permute.xlu0 %558
      %vm560 = vcmask 1039360
      %v561 = vsel %vm560, %v553, %v555
      %v562 = vsel %vm560, %v555, %v557
      %v563 = vsel %vm560, %v557, %v559
      %s564 = scalar_lea.vmem [#allocation1], 2
      %565 = vst [vmem:[%s564] ss:$4 sm:$0xff] %v535
      %v566 = vld.sshfl [vmem:[#allocation1] sm:$0xff pattern:$0x73625140]
      %v568 = vld.sshfl [vmem:[#allocation1 + $0x8] sm:$0xff pattern:$0x73625140]
      %v570 = vld.sshfl [vmem:[#allocation1 + $0x10] sm:$0xff pattern:$0x73625140]
      %v572 = vld.sshfl [vmem:[#allocation1 + $0x18] sm:$0xff pattern:$0x73625140]
      %574 = vrot.lane.b32.xlu0 %v566, 126
      %v575 = vpop.permute.xlu0 %574
      %576 = vrot.lane.b32.xlu0 %v568, 126
      %v577 = vpop.permute.xlu0 %576
      %578 = vrot.lane.b32.xlu0 %v570, 126
      %v579 = vpop.permute.xlu0 %578
      %580 = vrot.lane.b32.xlu0 %v572, 126
      %v581 = vpop.permute.xlu0 %580
      %vm582 = vcmask 1031168
      %v583 = vsel %vm582, %v575, %v577
      %v584 = vsel %vm582, %v577, %v579
      %v585 = vsel %vm582, %v579, %v581
      %s586 = scalar_lea.vmem [#allocation1], 3
      %587 = vst [vmem:[%s586] ss:$4 sm:$0xff] %v535
      %v588 = vld.sshfl [vmem:[#allocation1] sm:$0xff pattern:$0x73625140]
      %v590 = vld.sshfl [vmem:[#allocation1 + $0x8] sm:$0xff pattern:$0x73625140]
      %v592 = vld.sshfl [vmem:[#allocation1 + $0x10] sm:$0xff pattern:$0x73625140]
      %v594 = vld.sshfl [vmem:[#allocation1 + $0x18] sm:$0xff pattern:$0x73625140]
      %596 = vrot.lane.b32.xlu0 %v588, 110
      %v597 = vpop.permute.xlu0 %596
      %598 = vrot.lane.b32.xlu0 %v590, 110
      %v599 = vpop.permute.xlu0 %598
      %600 = vrot.lane.b32.xlu0 %v592, 110
      %v601 = vpop.permute.xlu0 %600
      %602 = vrot.lane.b32.xlu0 %v594, 110
      %v603 = vpop.permute.xlu0 %602
      %vm604 = vcmask 900096
      %v605 = vsel %vm604, %v597, %v599
      %v606 = vsel %vm604, %v599, %v601
      %v607 = vsel %vm604, %v601, %v603
      %608 = vst [vmem:[#allocation1] ss:$4 sm:$0xff] %v535
      %v609 = vld.sshfl [vmem:[#allocation1] sm:$0xff pattern:$0x73625140]
      %v611 = vld.sshfl [vmem:[#allocation1 + $0x8] sm:$0xff pattern:$0x73625140]
      %v613 = vld.sshfl [vmem:[#allocation1 + $0x10] sm:$0xff pattern:$0x73625140]
      %v615 = vld.sshfl [vmem:[#allocation1 + $0x18] sm:$0xff pattern:$0x73625140]
      %617 = vrot.lane.b32.xlu0 %v609, 109
      %v618 = vpop.permute.xlu0 %617
      %619 = vrot.lane.b32.xlu0 %v611, 109
      %v620 = vpop.permute.xlu0 %619
      %621 = vrot.lane.b32.xlu0 %v613, 109
      %v622 = vpop.permute.xlu0 %621
      %623 = vrot.lane.b32.xlu0 %v615, 109
      %v624 = vpop.permute.xlu0 %623
      %vm625 = vcmask 891904
      %v626 = vsel %vm625, %v618, %v620
      %v627 = vsel %vm625, %v620, %v622
      %v628 = vsel %vm625, %v622, %v624
      %s629 = scalar_lea.vmem [#allocation1], 1
      %630 = vst [vmem:[%s629] ss:$4 sm:$0xff] %v535
      %v631 = vld.sshfl [vmem:[#allocation1] sm:$0xff pattern:$0x73625140]
      %v633 = vld.sshfl [vmem:[#allocation1 + $0x8] sm:$0xff pattern:$0x73625140]
      %v635 = vld.sshfl [vmem:[#allocation1 + $0x10] sm:$0xff pattern:$0x73625140]
      %v637 = vld.sshfl [vmem:[#allocation1 + $0x18] sm:$0xff pattern:$0x73625140]
      %639 = vrot.lane.b32.xlu0 %v631, 108
      %v640 = vpop.permute.xlu0 %639
      %641 = vrot.lane.b32.xlu0 %v633, 108
      %v642 = vpop.permute.xlu0 %641
      %643 = vrot.lane.b32.xlu0 %v635, 108
      %v644 = vpop.permute.xlu0 %643
      %645 = vrot.lane.b32.xlu0 %v637, 108
      %v646 = vpop.permute.xlu0 %645
      %vm647 = vcmask 883712
      %v648 = vsel %vm647, %v640, %v642
      %v649 = vsel %vm647, %v642, %v644
      %v650 = vsel %vm647, %v644, %v646
      %s651 = scalar_lea.vmem [#allocation1], 2
      %652 = vst [vmem:[%s651] ss:$4 sm:$0xff] %v535
      %v653 = vld.sshfl [vmem:[#allocation1] sm:$0xff pattern:$0x73625140]
      %v655 = vld.sshfl [vmem:[#allocation1 + $0x8] sm:$0xff pattern:$0x73625140]
      %v657 = vld.sshfl [vmem:[#allocation1 + $0x10] sm:$0xff pattern:$0x73625140]
      %v659 = vld.sshfl [vmem:[#allocation1 + $0x18] sm:$0xff pattern:$0x73625140]
      %661 = vrot.lane.b32.xlu0 %v653, 92
      %v662 = vpop.permute.xlu0 %661
      %663 = vrot.lane.b32.xlu0 %v655, 92
      %v664 = vpop.permute.xlu0 %663
      %665 = vrot.lane.b32.xlu0 %v657, 92
      %v666 = vpop.permute.xlu0 %665
      %667 = vrot.lane.b32.xlu0 %v659, 92
      %v668 = vpop.permute.xlu0 %667
      %vm669 = vcmask 752640
      %v670 = vsel %vm669, %v662, %v664
      %v671 = vsel %vm669, %v664, %v666
      %v672 = vsel %vm669, %v666, %v668
      %s673 = scalar_lea.vmem [#allocation1], 3
      %674 = vst [vmem:[%s673] ss:$4 sm:$0xff] %v535
      %v675 = vld.sshfl [vmem:[#allocation1] sm:$0xff pattern:$0x73625140]
      %v677 = vld.sshfl [vmem:[#allocation1 + $0x8] sm:$0xff pattern:$0x73625140]
      %v679 = vld.sshfl [vmem:[#allocation1 + $0x10] sm:$0xff pattern:$0x73625140]
      %v681 = vld.sshfl [vmem:[#allocation1 + $0x18] sm:$0xff pattern:$0x73625140]
      %683 = vrot.lane.b32.xlu0 %v675, 91
      %v684 = vpop.permute.xlu0 %683
      %685 = vrot.lane.b32.xlu0 %v677, 91
      %v686 = vpop.permute.xlu0 %685
      %687 = vrot.lane.b32.xlu0 %v679, 91
      %v688 = vpop.permute.xlu0 %687
      %689 = vrot.lane.b32.xlu0 %v681, 91
      %v690 = vpop.permute.xlu0 %689
      %vm691 = vcmask 744448
      %v692 = vsel %vm691, %v684, %v686
      %v693 = vsel %vm691, %v686, %v688
      %v694 = vsel %vm691, %v688, %v690
      %695 = vst [vmem:[#allocation1] ss:$4 sm:$0xff] %v535
      %v696 = vld.sshfl [vmem:[#allocation1] sm:$0xff pattern:$0x73625140]
      %v698 = vld.sshfl [vmem:[#allocation1 + $0x8] sm:$0xff pattern:$0x73625140]
      %v700 = vld.sshfl [vmem:[#allocation1 + $0x10] sm:$0xff pattern:$0x73625140]
      %v702 = vld.sshfl [vmem:[#allocation1 + $0x18] sm:$0xff pattern:$0x73625140]
      %704 = vrot.lane.b32.xlu0 %v696, 90
      %v705 = vpop.permute.xlu0 %704
      %706 = vrot.lane.b32.xlu0 %v698, 90
      %v707 = vpop.permute.xlu0 %706
      %708 = vrot.lane.b32.xlu0 %v700, 90
      %v709 = vpop.permute.xlu0 %708
      %710 = vrot.lane.b32.xlu0 %v702, 90
      %v711 = vpop.permute.xlu0 %710
      %vm712 = vcmask 736256
      %v713 = vsel %vm712, %v705, %v707
      %v714 = vsel %vm712, %v707, %v709
      %v715 = vsel %vm712, %v709, %v711
      %vm716 = vcmask 1041408
      %v718 = vsel %vm716, %v538, %v561
      %v720 = vsel %vm716, %v539, %v562
      %v722 = vsel %vm716, %v540, %v563
      %vm723 = vcmask 1043456
      %v725 = vsel %vm723, %v718, %v583
      %v727 = vsel %vm723, %v720, %v584
      %v729 = vsel %vm723, %v722, %v585
      %vm730 = vcmask 1045504
      %v732 = vsel %vm730, %v725, %v605
      %v735 = vsel %vm730, %v727, %v606
      %v738 = vsel %vm730, %v729, %v607
      %v742 = vsel %vm716, %v626, %v648
      %v745 = vsel %vm716, %v627, %v649
      %v748 = vsel %vm716, %v628, %v650
      %v750 = vsel %vm723, %v742, %v670
      %v752 = vsel %vm723, %v745, %v671
      %v754 = vsel %vm723, %v748, %v672
      %v756 = vsel %vm730, %v750, %v692
      %v759 = vsel %vm730, %v752, %v693
      %v762 = vsel %vm730, %v754, %v694
      %v764 = vld [vmem:[%s4] sm:$0xf]
      %v765 = vld [vmem:[%s5] sm:$0xff]
      %767 = vset.pattern.permute.xlu0 0
      %768 = vperm.xlu0 %767, %v765
      %v769 = vpop.permute.xlu0 %768
      %vm771 = vcmask 293888
      %v773 = vsel %vm771, %v764, 0
      %v776 = vsel %vm716, %v713, 0
      %v779 = vsel %vm716, %v714, 0
      %v782 = vsel %vm716, %v715, 0
      %784 = vmatpush.bf16.msra.mxu0 0
      %785 = vmatpush.bf16.msra.mxu0 0
      %786 = vmatpush.bf16.msra.mxu0 0
      %787 = vmatpush.bf16.msra.mxu0 0
      %788 = vmatpush.bf16.msra.mxu0 0
      %789 = vmatpush.bf16.msra.mxu0 %v776
      %790 = vmatpush.bf16.msra.mxu0 %v756
      %791 = vmatpush.bf16.msra.mxu0 %v732
      %792 = vmatmul.bf16.gmra.mxu0 %v773
      %v793 = vpop.f32.mrf.mxu0
      %v794 = vadd.f32 %v769, %v793
      %v795 = vpop.f32.mrf.mxu0
      %796 = vdwg.mxu0
      %797 = vmatpush.bf16.msra.mxu0 0
      %798 = vmatpush.bf16.msra.mxu0 0
      %799 = vmatpush.bf16.msra.mxu0 0
      %800 = vmatpush.bf16.msra.mxu0 0
      %801 = vmatpush.bf16.msra.mxu0 0
      %802 = vmatpush.bf16.msra.mxu0 %v779
      %803 = vmatpush.bf16.msra.mxu0 %v759
      %804 = vmatpush.bf16.msra.mxu0 %v735
      %805 = vmatmul.bf16.gmra.mxu0 %v773
      %v806 = vpop.f32.mrf.mxu0
      %v807 = vadd.f32 %v769, %v806
      %v808 = vpop.f32.mrf.mxu0
      %809 = vdwg.mxu0
      %810 = vmatpush.bf16.msra.mxu0 0
      %811 = vmatpush.bf16.msra.mxu0 0
      %812 = vmatpush.bf16.msra.mxu0 0
      %813 = vmatpush.bf16.msra.mxu0 0
      %814 = vmatpush.bf16.msra.mxu0 0
      %815 = vmatpush.bf16.msra.mxu0 %v782
      %816 = vmatpush.bf16.msra.mxu0 %v762
      %817 = vmatpush.bf16.msra.mxu0 %v738
      %818 = vmatmul.bf16.gmra.mxu0 %v773
      %v819 = vpop.f32.mrf.mxu0
      %v820 = vadd.f32 %v769, %v819
      %v821 = vpop.f32.mrf.mxu0
      %822 = vdwg.mxu0
      %v823 = vld [vmem:[%s6] sm:$0xff]
      %v824 = vld [vmem:[%s7] sm:$0xff]
      %v826 = vperm.slane %v533, 0
      %v827 = vperm.slane %v533, 1
      %v828 = vperm.slane %v533, 2
      %v832 = vmul.f32 %v794, %v826
      %v833 = vmul.f32 %v807, %v827
      %v834 = vmul.f32 %v820, %v828
      %v835 = vadd.f32 %v832, %v833
      %v836 = vadd.f32 %v835, %v834
      %837 = vadd.xlane.f32.xlu0 %v836
      %v838 = vpop.xlane.xlu0 %837
      %v839 = vmul.f32 %v832, %v832
      %v840 = vmul.f32 %v833, %v833
      %v841 = vmul.f32 %v834, %v834
      %v842 = vadd.f32 %v839, %v840
      %v843 = vadd.f32 %v842, %v841
      %844 = vadd.xlane.f32.xlu0 %v843
      %v845 = vpop.xlane.xlu0 %844
      %v846 = vld [vmem:[%s3] sm:$0xff]
      %v847 = vmul.f32 %v846, %v838
      %vm848 = vcmask 7168
      %v849 = vsel %vm848, %v847, 0.0
      %850 = vadd.xlane.f32.xlu0 %v849
      %v851 = vpop.xlane.xlu0 %850
      %v852 = vrot.slane %v851, 4
      %v853 = vadd.f32 %v851, %v852
      %v854 = vrot.slane %v853, 2
      %v855 = vadd.f32 %v853, %v854
      %v856 = vrot.slane %v855, 1
      %v857 = vadd.f32 %v855, %v856
      %s858 = vtos %v857
      %v859 = vstv %s858
      %v860 = vmul.f32 %v859, 0.001953125
      %v861 = vmul.f32 %v846, %v860
      %v862 = vadd.f32 %v861, 0.0
      %v863 = vmul.f32 %v846, %v845
      %v864 = vsel %vm848, %v863, 0.0
      %865 = vadd.xlane.f32.xlu0 %v864
      %v866 = vpop.xlane.xlu0 %865
      %v867 = vrot.slane %v866, 4
      %v868 = vadd.f32 %v866, %v867
      %v869 = vrot.slane %v868, 2
      %v870 = vadd.f32 %v868, %v869
      %v871 = vrot.slane %v870, 1
      %v872 = vadd.f32 %v870, %v871
      %s873 = vtos %v872
      %v874 = vstv %s873
      %v875 = vmul.f32 %v874, 0.001953125
      %v876 = vmul.f32 %v846, %v875
      %v877 = vadd.f32 %v876, 0.0
      %s878 = scalar_lea.vmem %s3, 8
      %v879 = vld [vmem:[%s878] sm:$0xff]
      %v880 = vmul.f32 %v879, %v838
      %v881 = vsel %vm848, %v880, 0.0
      %882 = vadd.xlane.f32.xlu0 %v881
      %v883 = vpop.xlane.xlu0 %882
      %v884 = vrot.slane %v883, 4
      %v885 = vadd.f32 %v883, %v884
      %v886 = vrot.slane %v885, 2
      %v887 = vadd.f32 %v885, %v886
      %v888 = vrot.slane %v887, 1
      %v889 = vadd.f32 %v887, %v888
      %s890 = vtos %v889
      %v891 = vstv %s890
      %v892 = vmul.f32 %v891, 0.001953125
      %v893 = vmul.f32 %v879, %v892
      %v894 = vadd.f32 %v862, %v893
      %v895 = vmul.f32 %v879, %v845
      %v896 = vsel %vm848, %v895, 0.0
      %897 = vadd.xlane.f32.xlu0 %v896
      %v898 = vpop.xlane.xlu0 %897
      %v899 = vrot.slane %v898, 4
      %v900 = vadd.f32 %v898, %v899
      %v901 = vrot.slane %v900, 2
      %v902 = vadd.f32 %v900, %v901
      %v903 = vrot.slane %v902, 1
      %v904 = vadd.f32 %v902, %v903
      %s905 = vtos %v904
      %v906 = vstv %s905
      %v907 = vmul.f32 %v906, 0.001953125
      %v908 = vmul.f32 %v879, %v907
      %v909 = vadd.f32 %v877, %v908
      %s910 = scalar_lea.vmem %s3, 16
      %v911 = vld [vmem:[%s910] sm:$0xff]
      %v912 = vmul.f32 %v911, %v838
      %v913 = vsel %vm848, %v912, 0.0
      %914 = vadd.xlane.f32.xlu0 %v913
      %v915 = vpop.xlane.xlu0 %914
      %v916 = vrot.slane %v915, 4
      %v917 = vadd.f32 %v915, %v916
      %v918 = vrot.slane %v917, 2
      %v919 = vadd.f32 %v917, %v918
      %v920 = vrot.slane %v919, 1
      %v921 = vadd.f32 %v919, %v920
      %s922 = vtos %v921
      %v923 = vstv %s922
      %v924 = vmul.f32 %v923, 0.001953125
      %v925 = vmul.f32 %v911, %v924
      %v926 = vadd.f32 %v894, %v925
      %v927 = vmul.f32 %v911, %v845
      %v928 = vsel %vm848, %v927, 0.0
      %929 = vadd.xlane.f32.xlu0 %v928
      %v930 = vpop.xlane.xlu0 %929
      %v931 = vrot.slane %v930, 4
      %v932 = vadd.f32 %v930, %v931
      %v933 = vrot.slane %v932, 2
      %v934 = vadd.f32 %v932, %v933
      %v935 = vrot.slane %v934, 1
      %v936 = vadd.f32 %v934, %v935
      %s937 = vtos %v936
      %v938 = vstv %s937
      %v939 = vmul.f32 %v938, 0.001953125
      %v940 = vmul.f32 %v911, %v939
      %v941 = vadd.f32 %v909, %v940
      %s942 = scalar_lea.vmem %s3, 24
      %v943 = vld [vmem:[%s942] sm:$0xff]
      %v944 = vmul.f32 %v943, %v838
      %v945 = vsel %vm848, %v944, 0.0
      %946 = vadd.xlane.f32.xlu0 %v945
      %v947 = vpop.xlane.xlu0 %946
      %v948 = vrot.slane %v947, 4
      %v949 = vadd.f32 %v947, %v948
      %v950 = vrot.slane %v949, 2
      %v951 = vadd.f32 %v949, %v950
      %v952 = vrot.slane %v951, 1
      %v953 = vadd.f32 %v951, %v952
      %s954 = vtos %v953
      %v955 = vstv %s954
      %v956 = vmul.f32 %v955, 0.001953125
      %v957 = vmul.f32 %v943, %v956
      %v958 = vadd.f32 %v926, %v957
      %v959 = vmul.f32 %v943, %v845
      %v960 = vsel %vm848, %v959, 0.0
      %961 = vadd.xlane.f32.xlu0 %v960
      %v962 = vpop.xlane.xlu0 %961
      %v963 = vrot.slane %v962, 4
      %v964 = vadd.f32 %v962, %v963
      %v965 = vrot.slane %v964, 2
      %v966 = vadd.f32 %v964, %v965
      %v967 = vrot.slane %v966, 1
      %v968 = vadd.f32 %v966, %v967
      %s969 = vtos %v968
      %v970 = vstv %s969
      %v971 = vmul.f32 %v970, 0.001953125
      %v972 = vmul.f32 %v943, %v971
      %v973 = vadd.f32 %v941, %v972
      %v974 = vmul.f32 %v958, %v958
      %v975 = vsub.f32 %v973, %v974
      %v976 = vmax.f32 %v975, 0.0
      %978 = vset.pattern.permute.xlu0 0
      %979 = vperm.xlu0 %978, %v958
      %v980 = vpop.permute.xlu0 %979
      %v982 = vsub.f32 %v794, %v980
      %v983 = vsub.f32 %v807, %v980
      %v984 = vsub.f32 %v820, %v980
      %v985 = vadd.f32 %v976, 1e-05
      %v986 = vrsqrt.pop %v985
      %v987 = vmul.f32 %v986, %v985
      %v988 = vmul.f32 %v987, %v986
      %v989 = vmul.f32 0.5, %v988
      %v990 = vsub.f32 1.5, %v989
      %v991 = vmul.f32 %v986, %v990
      %vm992 = vweird.f32 %v985
      %vm993 = vweird.f32 %v986
      %vm994 = vmor %vm992, %vm993
      %v995 = vsel %vm994, %v986, %v991
      %v996 = vmul.f32 %v995, %v823
      %998 = vset.pattern.permute.xlu0 0
      %999 = vperm.xlu0 %998, %v996
      %v1000 = vpop.permute.xlu0 %999
      %v1002 = vmul.f32 %v982, %v1000
      %v1003 = vmul.f32 %v983, %v1000
      %v1004 = vmul.f32 %v984, %v1000
      %1006 = vset.pattern.permute.xlu0 0
      %1007 = vperm.xlu0 %1006, %v824
      %v1008 = vpop.permute.xlu0 %1007
      %v1010 = vadd.f32 %v1002, %v1008
      %v1011 = vadd.f32 %v1003, %v1008
      %v1012 = vadd.f32 %v1004, %v1008
      %v1013 = vxor.u32 %v1010, 2147483648
      %v1014 = vxor.u32 %v1011, 2147483648
      %v1015 = vxor.u32 %v1012, 2147483648
      %v1016 = vmul.f32 %v1013, 1.442695
      %v1017 = vpow.pop %v1016
      %v1018 = vmul.f32 %v1014, 1.442695
      %v1019 = vpow.pop %v1018
      %v1020 = vmul.f32 %v1015, 1.442695
      %v1021 = vpow.pop %v1020
      %v1022 = vadd.f32 %v1017, 1.0
      %v1023 = vadd.f32 %v1019, 1.0
      %v1024 = vadd.f32 %v1021, 1.0
      %v1025 = vrcp.pop %v1022
      %v1026 = vmul.f32 %v1022, %v1025
      %v1027 = vsub.f32 1.0, %v1026
      %v1028 = vmul.f32 %v1025, %v1027
      %v1029 = vadd.f32 %v1025, %v1028
      %vm1030 = vweird.f32 %v1022
      %vm1031 = vweird.f32 %v1025
      %vm1032 = vmor %vm1030, %vm1031
      %v1033 = vsel %vm1032, %v1025, %v1029
      %v1034 = vand.u32 2147483647, %v1022
      %vm1035 = vcmp.eq.f32.partialorder %v1034, 8.507059e+37
      %v1036 = vand.u32 %v1022, 2147483648
      %v1037 = vor.u32 1.1754944e-38, %v1036
      %v1038 = vsel %vm1035, %v1037, %v1033
      %v1039 = vmul.f32 1.0, %v1038
      %v1040 = vrcp.pop %v1023
      %v1041 = vmul.f32 %v1023, %v1040
      %v1042 = vsub.f32 1.0, %v1041
      %v1043 = vmul.f32 %v1040, %v1042
      %v1044 = vadd.f32 %v1040, %v1043
      %vm1045 = vweird.f32 %v1023
      %vm1046 = vweird.f32 %v1040
      %vm1047 = vmor %vm1045, %vm1046
      %v1048 = vsel %vm1047, %v1040, %v1044
      %v1049 = vand.u32 2147483647, %v1023
      %vm1050 = vcmp.eq.f32.partialorder %v1049, 8.507059e+37
      %v1051 = vand.u32 %v1023, 2147483648
      %v1052 = vor.u32 1.1754944e-38, %v1051
      %v1053 = vsel %vm1050, %v1052, %v1048
      %v1054 = vmul.f32 1.0, %v1053
      %v1055 = vrcp.pop %v1024
      %v1056 = vmul.f32 %v1024, %v1055
      %v1057 = vsub.f32 1.0, %v1056
      %v1058 = vmul.f32 %v1055, %v1057
      %v1059 = vadd.f32 %v1055, %v1058
      %vm1060 = vweird.f32 %v1024
      %vm1061 = vweird.f32 %v1055
      %vm1062 = vmor %vm1060, %vm1061
      %v1063 = vsel %vm1062, %v1055, %v1059
      %v1064 = vand.u32 2147483647, %v1024
      %vm1065 = vcmp.eq.f32.partialorder %v1064, 8.507059e+37
      %v1066 = vand.u32 %v1024, 2147483648
      %v1067 = vor.u32 1.1754944e-38, %v1066
      %v1068 = vsel %vm1065, %v1067, %v1063
      %v1069 = vmul.f32 1.0, %v1068
      %v1070 = vmul.f32 %v1010, %v1039
      %v1071 = vmul.f32 %v1011, %v1054
      %v1072 = vmul.f32 %v1012, %v1069
      %v1073 = vld [vmem:[%s526] sm:$0xff]
      %1075 = vset.pattern.permute.xlu0 0
      %1076 = vperm.xlu0 %1075, %v1073
      %v1077 = vpop.permute.xlu0 %1076
      %v1079 = vadd.f32 %v1070, %v1077
      %v1080 = vadd.f32 %v1071, %v1077
      %v1081 = vadd.f32 %v1072, %v1077
      %vm1082 = vcmask 150528
      %1083 = vst.msk [vmem:[#allocation2] sm:$0xf] %vm1082, 0
      %vm1084 = vcmask 1043608
      %1085 = vst.msk [vmem:[#allocation2 + $0xc] sm:$0xf] %vm1084, 0
      %v1086 = vmul.f32 %v1079, %v826
      %v1087 = vmul.f32 %v1080, %v827
      %v1088 = vmul.f32 %v1081, %v828
      %v1089 = vpack.c.bf16 %v1087, %v1086
      %v1090 = vpack.c.bf16 %v1088, %v1088
      %1093 = vrot.lane.b32.xlu0 %v1089, 19
      %v1094 = vpop.permute.xlu0 %1093
      %1095 = vrot.lane.b32.xlu0 %v1090, 19
      %v1096 = vpop.permute.xlu0 %1095
      %v1097 = vrot.slane %v1094, 4
      %v1098 = vrot.slane %v1096, 4
      %vm1099 = vcmask 154624
      %v1100 = vsel %vm1099, %v1097, %v1094
      %vm1101 = vcmask 1043456
      %v1102 = vsel %vm1101, %v1097, %v1098
      %v1103 = vsel %vm1099, %v1102, %v1096
      %vm1106 = vcmask 1047556
      %vm1107 = vmor %vm1106, %vm1084
      %1108 = vst.msk [vmem:[#allocation2] sm:$0xff] %vm1107, %v1100
      %vm1109 = vcmask 154628
      %vm1110 = vmor %vm1109, %vm723
      %1111 = vst.msk [vmem:[#allocation2 + $0x8] sm:$0xff] %vm1110, %v1103
      %v1112 = vld [vmem:[#allocation2] sm:$0xff]
      %v1113 = vld [vmem:[#allocation2 + $0x8] sm:$0xf]
      %v1114 = vld [vmem:[#allocation2] sm:$0xff]
      %v1115 = vld [vmem:[#allocation2 + $0x8] sm:$0xff]
      %v1118 = vunpack.c.l.b16 %v1112
      %v1119 = vunpack.c.h.b16 %v1112
      %v1120 = vunpack.c.l.b16 %v1113
      %v1121 = vpack.c.b16 %v1118, %v1118
      %v1122 = vpack.c.b16 %v1119, %v1119
      %v1123 = vpack.c.b16 %v1120, %v1120
      %v1126 = vunpack.c.l.b16 %v1114
      %v1127 = vunpack.c.h.b16 %v1114
      %v1128 = vunpack.c.l.b16 %v1115
      %v1129 = vunpack.c.h.b16 %v1115
      %v1130 = vpack.c.b16 %v1126, %v1126
      %v1131 = vpack.c.b16 %v1127, %v1127
      %v1132 = vpack.c.b16 %v1128, %v1128
      %v1133 = vpack.c.b16 %v1129, %v1129
      %1134 = vrot.lane.b32.xlu0 %v1130, 127
      %v1135 = vpop.permute.xlu0 %1134
      %1136 = vrot.lane.b32.xlu0 %v1131, 127
      %v1137 = vpop.permute.xlu0 %1136
      %1138 = vrot.lane.b32.xlu0 %v1132, 127
      %v1139 = vpop.permute.xlu0 %1138
      %1140 = vrot.lane.b32.xlu0 %v1133, 127
      %v1141 = vpop.permute.xlu0 %1140
      %v1142 = vsel %vm560, %v1135, %v1137
      %v1143 = vsel %vm560, %v1137, %v1139
      %v1144 = vsel %vm560, %v1139, %v1141
      %1145 = vrot.lane.b32.xlu0 %v1130, 126
      %v1146 = vpop.permute.xlu0 %1145
      %1147 = vrot.lane.b32.xlu0 %v1131, 126
      %v1148 = vpop.permute.xlu0 %1147
      %1149 = vrot.lane.b32.xlu0 %v1132, 126
      %v1150 = vpop.permute.xlu0 %1149
      %1151 = vrot.lane.b32.xlu0 %v1133, 126
      %v1152 = vpop.permute.xlu0 %1151
      %v1153 = vsel %vm582, %v1146, %v1148
      %v1154 = vsel %vm582, %v1148, %v1150
      %v1155 = vsel %vm582, %v1150, %v1152
      %1156 = vrot.lane.b32.xlu0 %v1130, 110
      %v1157 = vpop.permute.xlu0 %1156
      %1158 = vrot.lane.b32.xlu0 %v1131, 110
      %v1159 = vpop.permute.xlu0 %1158
      %1160 = vrot.lane.b32.xlu0 %v1132, 110
      %v1161 = vpop.permute.xlu0 %1160
      %1162 = vrot.lane.b32.xlu0 %v1133, 110
      %v1163 = vpop.permute.xlu0 %1162
      %v1164 = vsel %vm604, %v1157, %v1159
      %v1165 = vsel %vm604, %v1159, %v1161
      %v1166 = vsel %vm604, %v1161, %v1163
      %1167 = vrot.lane.b32.xlu0 %v1130, 109
      %v1168 = vpop.permute.xlu0 %1167
      %1169 = vrot.lane.b32.xlu0 %v1131, 109
      %v1170 = vpop.permute.xlu0 %1169
      %1171 = vrot.lane.b32.xlu0 %v1132, 109
      %v1172 = vpop.permute.xlu0 %1171
      %1173 = vrot.lane.b32.xlu0 %v1133, 109
      %v1174 = vpop.permute.xlu0 %1173
      %v1175 = vsel %vm625, %v1168, %v1170
      %v1176 = vsel %vm625, %v1170, %v1172
      %v1177 = vsel %vm625, %v1172, %v1174
      %1178 = vrot.lane.b32.xlu0 %v1130, 108
      %v1179 = vpop.permute.xlu0 %1178
      %1180 = vrot.lane.b32.xlu0 %v1131, 108
      %v1181 = vpop.permute.xlu0 %1180
      %1182 = vrot.lane.b32.xlu0 %v1132, 108
      %v1183 = vpop.permute.xlu0 %1182
      %1184 = vrot.lane.b32.xlu0 %v1133, 108
      %v1185 = vpop.permute.xlu0 %1184
      %v1186 = vsel %vm647, %v1179, %v1181
      %v1187 = vsel %vm647, %v1181, %v1183
      %v1188 = vsel %vm647, %v1183, %v1185
      %1189 = vrot.lane.b32.xlu0 %v1130, 92
      %v1190 = vpop.permute.xlu0 %1189
      %1191 = vrot.lane.b32.xlu0 %v1131, 92
      %v1192 = vpop.permute.xlu0 %1191
      %1193 = vrot.lane.b32.xlu0 %v1132, 92
      %v1194 = vpop.permute.xlu0 %1193
      %1195 = vrot.lane.b32.xlu0 %v1133, 92
      %v1196 = vpop.permute.xlu0 %1195
      %v1197 = vsel %vm669, %v1190, %v1192
      %v1198 = vsel %vm669, %v1192, %v1194
      %v1199 = vsel %vm669, %v1194, %v1196
      %1200 = vrot.lane.b32.xlu0 %v1130, 91
      %v1201 = vpop.permute.xlu0 %1200
      %1202 = vrot.lane.b32.xlu0 %v1131, 91
      %v1203 = vpop.permute.xlu0 %1202
      %1204 = vrot.lane.b32.xlu0 %v1132, 91
      %v1205 = vpop.permute.xlu0 %1204
      %1206 = vrot.lane.b32.xlu0 %v1133, 91
      %v1207 = vpop.permute.xlu0 %1206
      %v1208 = vsel %vm691, %v1201, %v1203
      %v1209 = vsel %vm691, %v1203, %v1205
      %v1210 = vsel %vm691, %v1205, %v1207
      %1211 = vrot.lane.b32.xlu0 %v1130, 90
      %v1212 = vpop.permute.xlu0 %1211
      %1213 = vrot.lane.b32.xlu0 %v1131, 90
      %v1214 = vpop.permute.xlu0 %1213
      %1215 = vrot.lane.b32.xlu0 %v1132, 90
      %v1216 = vpop.permute.xlu0 %1215
      %1217 = vrot.lane.b32.xlu0 %v1133, 90
      %v1218 = vpop.permute.xlu0 %1217
      %v1219 = vsel %vm712, %v1212, %v1214
      %v1220 = vsel %vm712, %v1214, %v1216
      %v1221 = vsel %vm712, %v1216, %v1218
      %v1224 = vsel %vm723, %v1121, %v1142
      %v1228 = vsel %vm723, %v1122, %v1143
      %v1232 = vsel %vm723, %v1123, %v1144
      %v1236 = vsel %vm723, %v1153, %v1164
      %v1240 = vsel %vm723, %v1154, %v1165
      %v1244 = vsel %vm723, %v1155, %v1166
      %v1248 = vsel %vm723, %v1175, %v1186
      %v1252 = vsel %vm723, %v1176, %v1187
      %v1256 = vsel %vm723, %v1177, %v1188
      %v1260 = vsel %vm723, %v1197, %v1208
      %v1264 = vsel %vm723, %v1198, %v1209
      %v1268 = vsel %vm723, %v1199, %v1210
      %v1270 = vld [vmem:[%s9] sm:$0xf]
      %v1271 = vld [vmem:[%s10] sm:$0xff]
      %1273 = vset.pattern.permute.xlu0 0
      %1274 = vperm.xlu0 %1273, %v1271
      %v1275 = vpop.permute.xlu0 %1274
      %vm1277 = vcmask 588800
      %v1279 = vsel %vm1277, %v1270, 0
      %v1282 = vsel %vm723, %v1219, 0
      %v1285 = vsel %vm723, %v1220, 0
      %v1288 = vsel %vm723, %v1221, 0
      %1290 = vmatpush.bf16.msra.mxu0 0
      %1291 = vmatpush.bf16.msra.mxu0 0
      %1292 = vmatpush.bf16.msra.mxu0 0
      %1293 = vmatpush.bf16.msra.mxu0 %v1282
      %1294 = vmatpush.bf16.msra.mxu0 %v1260
      %1295 = vmatpush.bf16.msra.mxu0 %v1248
      %1296 = vmatpush.bf16.msra.mxu0 %v1236
      %1297 = vmatpush.bf16.msra.mxu0 %v1224
      %1298 = vmatmul.bf16.gmra.mxu0 %v1279
      %v1299 = vpop.f32.mrf.mxu0
      %v1300 = vadd.f32 %v1275, %v1299
      %v1301 = vpop.f32.mrf.mxu0
      %1302 = vdwg.mxu0
      %1303 = vmatpush.bf16.msra.mxu0 0
      %1304 = vmatpush.bf16.msra.mxu0 0
      %1305 = vmatpush.bf16.msra.mxu0 0
      %1306 = vmatpush.bf16.msra.mxu0 %v1285
      %1307 = vmatpush.bf16.msra.mxu0 %v1264
      %1308 = vmatpush.bf16.msra.mxu0 %v1252
      %1309 = vmatpush.bf16.msra.mxu0 %v1240
      %1310 = vmatpush.bf16.msra.mxu0 %v1228
      %1311 = vmatmul.bf16.gmra.mxu0 %v1279
      %v1312 = vpop.f32.mrf.mxu0
      %v1313 = vadd.f32 %v1275, %v1312
      %v1314 = vpop.f32.mrf.mxu0
      %1315 = vdwg.mxu0
      %1316 = vmatpush.bf16.msra.mxu0 0
      %1317 = vmatpush.bf16.msra.mxu0 0
      %1318 = vmatpush.bf16.msra.mxu0 0
      %1319 = vmatpush.bf16.msra.mxu0 %v1288
      %1320 = vmatpush.bf16.msra.mxu0 %v1268
      %1321 = vmatpush.bf16.msra.mxu0 %v1256
      %1322 = vmatpush.bf16.msra.mxu0 %v1244
      %1323 = vmatpush.bf16.msra.mxu0 %v1232
      %1324 = vmatmul.bf16.gmra.mxu0 %v1279
      %v1325 = vpop.f32.mrf.mxu0
      %v1326 = vadd.f32 %v1275, %v1325
      %v1327 = vpop.f32.mrf.mxu0
      %1328 = vdwg.mxu0
      %v1329 = vld [vmem:[%s11] sm:$0xff]
      %v1330 = vld [vmem:[%s12] sm:$0xff]
      %v1331 = vmul.f32 %v1300, %v826
      %v1332 = vmul.f32 %v1313, %v827
      %v1333 = vmul.f32 %v1326, %v828
      %v1334 = vadd.f32 %v1331, %v1332
      %v1335 = vadd.f32 %v1334, %v1333
      %1336 = vadd.xlane.f32.xlu0 %v1335
      %v1337 = vpop.xlane.xlu0 %1336
      %v1338 = vmul.f32 %v1331, %v1331
      %v1339 = vmul.f32 %v1332, %v1332
      %v1340 = vmul.f32 %v1333, %v1333
      %v1341 = vadd.f32 %v1338, %v1339
      %v1342 = vadd.f32 %v1341, %v1340
      %1343 = vadd.xlane.f32.xlu0 %v1342
      %v1344 = vpop.xlane.xlu0 %1343
      %v1345 = vld [vmem:[%s3] sm:$0xff]
      %v1346 = vmul.f32 %v1345, %v1337
      %v1347 = vsel %vm848, %v1346, 0.0
      %1348 = vadd.xlane.f32.xlu0 %v1347
      %v1349 = vpop.xlane.xlu0 %1348
      %v1350 = vrot.slane %v1349, 4
      %v1351 = vadd.f32 %v1349, %v1350
      %v1352 = vrot.slane %v1351, 2
      %v1353 = vadd.f32 %v1351, %v1352
      %v1354 = vrot.slane %v1353, 1
      %v1355 = vadd.f32 %v1353, %v1354
      %s1356 = vtos %v1355
      %v1357 = vstv %s1356
      %v1358 = vmul.f32 %v1357, 0.001953125
      %v1359 = vmul.f32 %v1345, %v1358
      %v1360 = vadd.f32 %v1359, 0.0
      %v1361 = vmul.f32 %v1345, %v1344
      %v1362 = vsel %vm848, %v1361, 0.0
      %1363 = vadd.xlane.f32.xlu0 %v1362
      %v1364 = vpop.xlane.xlu0 %1363
      %v1365 = vrot.slane %v1364, 4
      %v1366 = vadd.f32 %v1364, %v1365
      %v1367 = vrot.slane %v1366, 2
      %v1368 = vadd.f32 %v1366, %v1367
      %v1369 = vrot.slane %v1368, 1
      %v1370 = vadd.f32 %v1368, %v1369
      %s1371 = vtos %v1370
      %v1372 = vstv %s1371
      %v1373 = vmul.f32 %v1372, 0.001953125
      %v1374 = vmul.f32 %v1345, %v1373
      %v1375 = vadd.f32 %v1374, 0.0
      %v1376 = vld [vmem:[%s878] sm:$0xff]
      %v1377 = vmul.f32 %v1376, %v1337
      %v1378 = vsel %vm848, %v1377, 0.0
      %1379 = vadd.xlane.f32.xlu0 %v1378
      %v1380 = vpop.xlane.xlu0 %1379
      %v1381 = vrot.slane %v1380, 4
      %v1382 = vadd.f32 %v1380, %v1381
      %v1383 = vrot.slane %v1382, 2
      %v1384 = vadd.f32 %v1382, %v1383
      %v1385 = vrot.slane %v1384, 1
      %v1386 = vadd.f32 %v1384, %v1385
      %s1387 = vtos %v1386
      %v1388 = vstv %s1387
      %v1389 = vmul.f32 %v1388, 0.001953125
      %v1390 = vmul.f32 %v1376, %v1389
      %v1391 = vadd.f32 %v1360, %v1390
      %v1392 = vmul.f32 %v1376, %v1344
      %v1393 = vsel %vm848, %v1392, 0.0
      %1394 = vadd.xlane.f32.xlu0 %v1393
      %v1395 = vpop.xlane.xlu0 %1394
      %v1396 = vrot.slane %v1395, 4
      %v1397 = vadd.f32 %v1395, %v1396
      %v1398 = vrot.slane %v1397, 2
      %v1399 = vadd.f32 %v1397, %v1398
      %v1400 = vrot.slane %v1399, 1
      %v1401 = vadd.f32 %v1399, %v1400
      %s1402 = vtos %v1401
      %v1403 = vstv %s1402
      %v1404 = vmul.f32 %v1403, 0.001953125
      %v1405 = vmul.f32 %v1376, %v1404
      %v1406 = vadd.f32 %v1375, %v1405
      %v1407 = vld [vmem:[%s910] sm:$0xff]
      %v1408 = vmul.f32 %v1407, %v1337
      %v1409 = vsel %vm848, %v1408, 0.0
      %1410 = vadd.xlane.f32.xlu0 %v1409
      %v1411 = vpop.xlane.xlu0 %1410
      %v1412 = vrot.slane %v1411, 4
      %v1413 = vadd.f32 %v1411, %v1412
      %v1414 = vrot.slane %v1413, 2
      %v1415 = vadd.f32 %v1413, %v1414
      %v1416 = vrot.slane %v1415, 1
      %v1417 = vadd.f32 %v1415, %v1416
      %s1418 = vtos %v1417
      %v1419 = vstv %s1418
      %v1420 = vmul.f32 %v1419, 0.001953125
      %v1421 = vmul.f32 %v1407, %v1420
      %v1422 = vadd.f32 %v1391, %v1421
      %v1423 = vmul.f32 %v1407, %v1344
      %v1424 = vsel %vm848, %v1423, 0.0
      %1425 = vadd.xlane.f32.xlu0 %v1424
      %v1426 = vpop.xlane.xlu0 %1425
      %v1427 = vrot.slane %v1426, 4
      %v1428 = vadd.f32 %v1426, %v1427
      %v1429 = vrot.slane %v1428, 2
      %v1430 = vadd.f32 %v1428, %v1429
      %v1431 = vrot.slane %v1430, 1
      %v1432 = vadd.f32 %v1430, %v1431
      %s1433 = vtos %v1432
      %v1434 = vstv %s1433
      %v1435 = vmul.f32 %v1434, 0.001953125
      %v1436 = vmul.f32 %v1407, %v1435
      %v1437 = vadd.f32 %v1406, %v1436
      %v1438 = vld [vmem:[%s942] sm:$0xff]
      %v1439 = vmul.f32 %v1438, %v1337
      %v1440 = vsel %vm848, %v1439, 0.0
      %1441 = vadd.xlane.f32.xlu0 %v1440
      %v1442 = vpop.xlane.xlu0 %1441
      %v1443 = vrot.slane %v1442, 4
      %v1444 = vadd.f32 %v1442, %v1443
      %v1445 = vrot.slane %v1444, 2
      %v1446 = vadd.f32 %v1444, %v1445
      %v1447 = vrot.slane %v1446, 1
      %v1448 = vadd.f32 %v1446, %v1447
      %s1449 = vtos %v1448
      %v1450 = vstv %s1449
      %v1451 = vmul.f32 %v1450, 0.001953125
      %v1452 = vmul.f32 %v1438, %v1451
      %v1453 = vadd.f32 %v1422, %v1452
      %v1454 = vmul.f32 %v1438, %v1344
      %v1455 = vsel %vm848, %v1454, 0.0
      %1456 = vadd.xlane.f32.xlu0 %v1455
      %v1457 = vpop.xlane.xlu0 %1456
      %v1458 = vrot.slane %v1457, 4
      %v1459 = vadd.f32 %v1457, %v1458
      %v1460 = vrot.slane %v1459, 2
      %v1461 = vadd.f32 %v1459, %v1460
      %v1462 = vrot.slane %v1461, 1
      %v1463 = vadd.f32 %v1461, %v1462
      %s1464 = vtos %v1463
      %v1465 = vstv %s1464
      %v1466 = vmul.f32 %v1465, 0.001953125
      %v1467 = vmul.f32 %v1438, %v1466
      %v1468 = vadd.f32 %v1437, %v1467
      %v1469 = vmul.f32 %v1453, %v1453
      %v1470 = vsub.f32 %v1468, %v1469
      %v1471 = vmax.f32 %v1470, 0.0
      %1473 = vset.pattern.permute.xlu0 0
      %1474 = vperm.xlu0 %1473, %v1453
      %v1475 = vpop.permute.xlu0 %1474
      %v1477 = vsub.f32 %v1300, %v1475
      %v1478 = vsub.f32 %v1313, %v1475
      %v1479 = vsub.f32 %v1326, %v1475
      %v1480 = vadd.f32 %v1471, 1e-05
      %v1481 = vrsqrt.pop %v1480
      %v1482 = vmul.f32 %v1481, %v1480
      %v1483 = vmul.f32 %v1482, %v1481
      %v1484 = vmul.f32 0.5, %v1483
      %v1485 = vsub.f32 1.5, %v1484
      %v1486 = vmul.f32 %v1481, %v1485
      %vm1487 = vweird.f32 %v1480
      %vm1488 = vweird.f32 %v1481
      %vm1489 = vmor %vm1487, %vm1488
      %v1490 = vsel %vm1489, %v1481, %v1486
      %v1491 = vmul.f32 %v1490, %v1329
      %1493 = vset.pattern.permute.xlu0 0
      %1494 = vperm.xlu0 %1493, %v1491
      %v1495 = vpop.permute.xlu0 %1494
      %v1497 = vmul.f32 %v1477, %v1495
      %v1498 = vmul.f32 %v1478, %v1495
      %v1499 = vmul.f32 %v1479, %v1495
      %1501 = vset.pattern.permute.xlu0 0
      %1502 = vperm.xlu0 %1501, %v1330
      %v1503 = vpop.permute.xlu0 %1502
      %v1505 = vadd.f32 %v1497, %v1503
      %v1506 = vadd.f32 %v1498, %v1503
      %v1507 = vadd.f32 %v1499, %v1503
      %v1508 = vxor.u32 %v1505, 2147483648
      %v1509 = vxor.u32 %v1506, 2147483648
      %v1510 = vxor.u32 %v1507, 2147483648
      %v1511 = vmul.f32 %v1508, 1.442695
      %v1512 = vpow.pop %v1511
      %v1513 = vmul.f32 %v1509, 1.442695
      %v1514 = vpow.pop %v1513
      %v1515 = vmul.f32 %v1510, 1.442695
      %v1516 = vpow.pop %v1515
      %v1517 = vadd.f32 %v1512, 1.0
      %v1518 = vadd.f32 %v1514, 1.0
      %v1519 = vadd.f32 %v1516, 1.0
      %v1520 = vrcp.pop %v1517
      %v1521 = vmul.f32 %v1517, %v1520
      %v1522 = vsub.f32 1.0, %v1521
      %v1523 = vmul.f32 %v1520, %v1522
      %v1524 = vadd.f32 %v1520, %v1523
      %vm1525 = vweird.f32 %v1517
      %vm1526 = vweird.f32 %v1520
      %vm1527 = vmor %vm1525, %vm1526
      %v1528 = vsel %vm1527, %v1520, %v1524
      %v1529 = vand.u32 2147483647, %v1517
      %vm1530 = vcmp.eq.f32.partialorder %v1529, 8.507059e+37
      %v1531 = vand.u32 %v1517, 2147483648
      %v1532 = vor.u32 1.1754944e-38, %v1531
      %v1533 = vsel %vm1530, %v1532, %v1528
      %v1534 = vmul.f32 1.0, %v1533
      %v1535 = vrcp.pop %v1518
      %v1536 = vmul.f32 %v1518, %v1535
      %v1537 = vsub.f32 1.0, %v1536
      %v1538 = vmul.f32 %v1535, %v1537
      %v1539 = vadd.f32 %v1535, %v1538
      %vm1540 = vweird.f32 %v1518
      %vm1541 = vweird.f32 %v1535
      %vm1542 = vmor %vm1540, %vm1541
      %v1543 = vsel %vm1542, %v1535, %v1539
      %v1544 = vand.u32 2147483647, %v1518
      %vm1545 = vcmp.eq.f32.partialorder %v1544, 8.507059e+37
      %v1546 = vand.u32 %v1518, 2147483648
      %v1547 = vor.u32 1.1754944e-38, %v1546
      %v1548 = vsel %vm1545, %v1547, %v1543
      %v1549 = vmul.f32 1.0, %v1548
      %v1550 = vrcp.pop %v1519
      %v1551 = vmul.f32 %v1519, %v1550
      %v1552 = vsub.f32 1.0, %v1551
      %v1553 = vmul.f32 %v1550, %v1552
      %v1554 = vadd.f32 %v1550, %v1553
      %vm1555 = vweird.f32 %v1519
      %vm1556 = vweird.f32 %v1550
      %vm1557 = vmor %vm1555, %vm1556
      %v1558 = vsel %vm1557, %v1550, %v1554
      %v1559 = vand.u32 2147483647, %v1519
      %vm1560 = vcmp.eq.f32.partialorder %v1559, 8.507059e+37
      %v1561 = vand.u32 %v1519, 2147483648
      %v1562 = vor.u32 1.1754944e-38, %v1561
      %v1563 = vsel %vm1560, %v1562, %v1558
      %v1564 = vmul.f32 1.0, %v1563
      %v1565 = vmul.f32 %v1505, %v1534
      %v1566 = vmul.f32 %v1506, %v1549
      %v1567 = vmul.f32 %v1507, %v1564
      %v1568 = vld [vmem:[%s13] sm:$0xf]
      %v1569 = vld [vmem:[%s522] sm:$0xff]
      %v1570 = vld [vmem:[%s522 + $0x8] sm:$0xf]
      %1573 = vst [vmem:[#allocation1] ss:$2 sm:$0xff] %v1569
      %s1574 = scalar_lea.vmem [#allocation1], 16
      %1575 = vst [vmem:[%s1574] ss:$2 sm:$0xff] %v1570
      %v1576 = vld.sshfl [vmem:[#allocation1] sm:$0xff pattern:$0x75316420]
      %v1577 = vld.sshfl [vmem:[#allocation1 + $0x8] sm:$0xff pattern:$0x75316420]
      %v1578 = vld.sshfl [vmem:[#allocation1 + $0x10] sm:$0xff pattern:$0x75316420]
      %v1582 = vpack.c.bf16 %v1576, %v1576
      %v1583 = vpack.c.bf16 %v1577, %v1577
      %v1584 = vpack.c.bf16 %v1578, %v1578
      %v1585 = vld [vmem:[%s14] sm:$0xff]
      %1587 = vset.pattern.permute.xlu0 0
      %1588 = vperm.xlu0 %1587, %v1585
      %v1589 = vpop.permute.xlu0 %1588
      %vm1591 = vcmask 31744
      %v1593 = vsel %vm1591, %v1568, 0
      %v1596 = vsel %vm716, %v1582, 0
      %v1599 = vsel %vm716, %v1583, 0
      %v1602 = vsel %vm716, %v1584, 0
      %1604 = vmatpush.bf16.msra.mxu0 0
      %1605 = vmatpush.bf16.msra.mxu0 0
      %1606 = vmatpush.bf16.msra.mxu0 0
      %1607 = vmatpush.bf16.msra.mxu0 0
      %1608 = vmatpush.bf16.msra.mxu0 0
      %1609 = vmatpush.bf16.msra.mxu0 0
      %1610 = vmatpush.bf16.msra.mxu0 0
      %1611 = vmatpush.bf16.msra.mxu0 %v1596
      %1612 = vmatmul.bf16.gmra.mxu0 %v1593
      %v1613 = vpop.f32.mrf.mxu0
      %v1614 = vadd.f32 %v1589, %v1613
      %v1615 = vpop.f32.mrf.mxu0
      %1616 = vdwg.mxu0
      %1617 = vmatpush.bf16.msra.mxu0 0
      %1618 = vmatpush.bf16.msra.mxu0 0
      %1619 = vmatpush.bf16.msra.mxu0 0
      %1620 = vmatpush.bf16.msra.mxu0 0
      %1621 = vmatpush.bf16.msra.mxu0 0
      %1622 = vmatpush.bf16.msra.mxu0 0
      %1623 = vmatpush.bf16.msra.mxu0 0
      %1624 = vmatpush.bf16.msra.mxu0 %v1599
      %1625 = vmatmul.bf16.gmra.mxu0 %v1593
      %v1626 = vpop.f32.mrf.mxu0
      %v1627 = vadd.f32 %v1589, %v1626
      %v1628 = vpop.f32.mrf.mxu0
      %1629 = vdwg.mxu0
      %1630 = vmatpush.bf16.msra.mxu0 0
      %1631 = vmatpush.bf16.msra.mxu0 0
      %1632 = vmatpush.bf16.msra.mxu0 0
      %1633 = vmatpush.bf16.msra.mxu0 0
      %1634 = vmatpush.bf16.msra.mxu0 0
      %1635 = vmatpush.bf16.msra.mxu0 0
      %1636 = vmatpush.bf16.msra.mxu0 0
      %1637 = vmatpush.bf16.msra.mxu0 %v1602
      %1638 = vmatmul.bf16.gmra.mxu0 %v1593
      %v1639 = vpop.f32.mrf.mxu0
      %v1640 = vadd.f32 %v1589, %v1639
      %v1641 = vpop.f32.mrf.mxu0
      %1642 = vdwg.mxu0
      %v1643 = vadd.f32 %v1565, %v1614
      %v1644 = vadd.f32 %v1566, %v1627
      %v1645 = vadd.f32 %v1567, %v1640
      %1646 = vst [vmem:[%s531] sm:$0xff] %v1643
      %1647 = vst [vmem:[%s531 + $0x8] sm:$0xff] %v1644
      %1648 = vst [vmem:[%s531 + $0x10] sm:$0xff] %v1645
      %p1649 = scmp.lt.s32.totalorder %s26, 1
      %s1650 = scalar_select %p1649, %s26, 1
      %s1651 = smul.addr %s1650, 3
      %s1652 = smul.addr %s1651, 8
      %s1653 = scalar_lea.vmem %s15, %s1652
      // Predicated region
      $region81: #{resnet_block_apply.1} parent=79 // pred_check
        %p1654 = pneg %p374
      $region82: #{resnet_block_apply.1} parent=79 // pred_check_branch
        %1656 = sbr.rel (%p1654) target = $region84
      $region83: #{resnet_block_apply.1} parent=79 // pred_region
        _
      $region84: #{resnet_block_apply.1} parent=79 // pred_fallthru
        _
    $region80: #{resnet_block_apply.1} parent=5 // pred_fallthru
      _
    %p1657 = scmp.le.s32.totalorder 2, %s21
    // Predicated region
    $region85: #{resnet_block_apply.1} parent=5 // pred_check
      %p1658 = pneg %p1657
    $region86: #{resnet_block_apply.1} parent=5 // pred_check_branch
      %1660 = sbr.rel (%p1658) target = $region88
    $region87: #{resnet_block_apply.1} parent=5 // pred_region
      %s1661 = ssub.s32 %s21, 2
      // Predicated region
      $region89: #{resnet_block_apply.1} parent=87 // pred_check
        %p1662 = pneg %p380
      $region90: #{resnet_block_apply.1} parent=87 // pred_check_branch
        %1664 = sbr.rel (%p1662) target = $region92
      $region91: #{resnet_block_apply.1} parent=87 // pred_region
        %p1665 = scmp.lt.s32.totalorder %s27, 1
        %s1666 = scalar_select %p1665, %s27, 1
        %s1667 = smul.addr %s1666, 3
        %s1668 = smul.addr %s1667, 8
        %s1669 = scalar_lea.vmem %s15, %s1668
      $region92: #{resnet_block_apply.1} parent=87 // pred_fallthru
        _
    $region88: #{resnet_block_apply.1} parent=5 // pred_fallthru
      _
  $region6: #{resnet_block_apply.1} parent=0 // loop_footer
    %s25 = sadd.s32 1, %s21
  $region7: #{resnet_block_apply.1} parent=0 // loop_footer_branch
    %20 = sbr.rel target = $region3
  $region8: #{resnet_block_apply.1} parent=0 // loop_exit
    _

</llo_original>
